<compile_context>
chip_gen: v6e
topology: v6e:2x2x1
jax: 0.10.0
libtpu: 0.0.40
codegen_flags: <defaults>
</compile_context>

<pallas_src>
import functools

import jax
import jax.numpy as jnp
from jax.experimental import pallas as pl
from jax.experimental.pallas import tpu as pltpu


# ----------------------------------------------------------------------------
# Hardware-aware defaults & helpers
# ----------------------------------------------------------------------------
def _round_up(v, m):
    return ((v + m - 1) // m) * m


def _default_tiling():
    """(tm, vmem_limit_bytes) picked per TPU generation."""
    vmem_bytes = None
    try:
        info = pltpu.get_tpu_info()
        vmem_bytes = getattr(info, "vmem_capacity_bytes", None)
    except Exception:
        vmem_bytes = None
    if vmem_bytes is None or vmem_bytes <= 96 * 1024 * 1024:
        # v7x-class (64 MiB VMEM/TC) or unknown part: conservative.
        return 256, 48 * 1024 * 1024
    # v5e / v6e: 128 MiB VMEM.
    return 512, 96 * 1024 * 1024


def _choose_tm(M, tm_req):
    """Sublane-aligned row tile; prefer one that divides M so no padding copy is needed."""
    tm_req = max(8, _round_up(int(tm_req), 8))
    if M % 8 == 0:
        upper = min(tm_req, M)
        upper = (upper // 8) * 8
        for cand in range(upper, 7, -8):
            if M % cand == 0:
                return cand
    return min(tm_req, _round_up(M, 8))


@functools.lru_cache(maxsize=1)
def _single_buffer_supported():
    """Probe once whether pipeline_mode=pl.Buffered(1) lowers on this JAX/Mosaic version."""
    if not hasattr(pl, "Buffered"):
        return False

    def _probe(x_ref, w_ref, o_ref):
        o_ref[...] = x_ref[...] + w_ref[...]

    try:
        x = jnp.zeros((16, 128), jnp.float32)
        w = jnp.zeros((8, 128), jnp.float32)
        out = pl.pallas_call(
            _probe,
            out_shape=jax.ShapeDtypeStruct((16, 128), jnp.float32),
            grid=(2,),
            in_specs=[
                pl.BlockSpec((8, 128), lambda i: (i, 0)),
                pl.BlockSpec((8, 128), lambda i: (0, 0), pipeline_mode=pl.Buffered(1)),
            ],
            out_specs=pl.BlockSpec((8, 128), lambda i: (i, 0)),
        )(x, w)
        jax.block_until_ready(out)
        return True
    except Exception:
        return False


def _const_spec(shape, single_buffer):
    """BlockSpec for a block whose index is constant across the grid (weights/biases)."""
    idx = lambda *_: (0,) * len(shape)
    if single_buffer:
        return pl.BlockSpec(shape, idx, pipeline_mode=pl.Buffered(1))
    return pl.BlockSpec(shape, idx)


# ----------------------------------------------------------------------------
# Kernels
# ----------------------------------------------------------------------------
def _attention_kernel(x_ref, g_ref, b_ref, wqkv_ref, wo_ref, bo_ref, y_ref,
                      *, num_heads, eps):
    """One batch element: y = Attention(LN(x)) + x."""
    x = x_ref[0].astype(jnp.float32)                     # (S, D)
    S, D = x.shape
    dh = D // num_heads
    scale = float(dh) ** -0.5
    cdt = wqkv_ref.dtype                                 # weights arrive pre-cast (bf16 or f32)

    # LayerNorm (input_norm), biased variance like torch.nn.LayerNorm.
    mean = jnp.mean(x, axis=-1, keepdims=True)
    xc = x - mean
    var = jnp.mean(xc * xc, axis=-1, keepdims=True)
    xn = xc * jax.lax.rsqrt(var + eps) * g_ref[...] + b_ref[...]

    # Fused QKV: one row-dense (S, D) @ (D, 3D) MXU matmul, f32 accumulation.
    qkv = jnp.dot(xn.astype(cdt), wqkv_ref[...], preferred_element_type=jnp.float32)
    q = qkv[:, 0 * D:1 * D]
    k = qkv[:, 1 * D:2 * D]
    v = qkv[:, 2 * D:3 * D]

    # Per-head softmax attention (static unrolled loop; see TODO for head/query tiling).
    heads = []
    for h in range(num_heads):
        lo = h * dh
        qh, kh, vh = q[:, lo:lo + dh], k[:, lo:lo + dh], v[:, lo:lo + dh]
        s = jax.lax.dot_general(qh, kh, (((1,), (1,)), ((), ())),
                                preferred_element_type=jnp.float32) * scale
        s = s - jnp.max(s, axis=-1, keepdims=True)
        p = jnp.exp(s)
        p = p / jnp.sum(p, axis=-1, keepdims=True)
        heads.append(jnp.dot(p.astype(cdt), vh.astype(cdt),
                             preferred_element_type=jnp.float32))     # (S, dh)

    # Single dense output projection: (S, D) @ (D, D), K=D contraction (MXU row-dense).
    out_cat = jnp.concatenate(heads, axis=-1)            # (S, D)
    y = jnp.dot(out_cat.astype(cdt), wo_ref[...],
                preferred_element_type=jnp.float32) + bo_ref[...] + x
    y_ref[0] = y.astype(y_ref.dtype)


def _ffn_gate_kernel(y_ref, xin_ref, g_ref, b_ref, w1_ref, b1_ref, w2_ref, b2_ref,
                     wg_ref, og_ref, ob_ref, o_ref, *, eps, apply_out_ln):
    """Row tile: o = (FFN(LN(y)) + y) * sigmoid(x_in @ w_gate), optionally followed by norm_out."""
    cdt = w1_ref.dtype
    y = y_ref[...].astype(jnp.float32)                   # (tm, D) residual stream (post-attn)
    x_in = xin_ref[...].astype(jnp.float32)              # (tm, D) layer input (gate source)

    # Gate: sigmoid(x_in @ w_gate) as a VPU multiply + cross-lane reduce (no lane-sparse N=1 matmul).
    z = jax.nn.sigmoid(jnp.sum(x_in * wg_ref[...], axis=-1, keepdims=True))

    # LayerNorm (FFN input_norm).
    mean = jnp.mean(y, axis=-1, keepdims=True)
    yc = y - mean
    var = jnp.mean(yc * yc, axis=-1, keepdims=True)
    yn = yc * jax.lax.rsqrt(var + eps) * g_ref[...] + b_ref[...]

    h = jnp.dot(yn.astype(cdt), w1_ref[...], preferred_element_type=jnp.float32) + b1_ref[...]
    h = jax.nn.gelu(h, approximate=False)                # nn.GELU default = exact (erf)
    ffn_out = jnp.dot(h.astype(cdt), w2_ref[...], preferred_element_type=jnp.float32) + b2_ref[...]

    out = (ffn_out + y) * z
    if apply_out_ln:                                     # fused norm_out (last layer only)
        mean2 = jnp.mean(out, axis=-1, keepdims=True)
        oc = out - mean2
        var2 = jnp.mean(oc * oc, axis=-1, keepdims=True)
        out = oc * jax.lax.rsqrt(var2 + eps) * og_ref[...] + ob_ref[...]
    o_ref[...] = out.astype(o_ref.dtype)


# ----------------------------------------------------------------------------
# Wrappers
# ----------------------------------------------------------------------------
def _attention_block(x, p, *, num_heads, eps, vmem_limit_bytes):
    B, S, D = x.shape
    sb = _single_buffer_supported()
    kernel = functools.partial(_attention_kernel, num_heads=num_heads, eps=eps)

    return pl.pallas_call(
        kernel,
        out_shape=jax.ShapeDtypeStruct((B, S, D), x.dtype),
        grid_spec=pltpu.PrefetchScalarGridSpec(
            num_scalar_prefetch=0,
            grid=(B,),
            in_specs=[
                pl.BlockSpec((1, S, D), lambda b: (b, 0, 0)),   # x (one batch element)
                _const_spec((1, D), sb),                        # LN gamma
                _const_spec((1, D), sb),                        # LN beta
                _const_spec((D, 3 * D), sb),                    # fused Wqkv (compute dtype)
                _const_spec((D, D), sb),                        # Wo (compute dtype)
                _const_spec((1, D), sb),                        # bo
            ],
            out_specs=pl.BlockSpec((1, S, D), lambda b: (b, 0, 0)),
        ),
        compiler_params=pltpu.CompilerParams(
            dimension_semantics=("parallel",),
            vmem_limit_bytes=vmem_limit_bytes,
        ),
    )(x, p["ln_g"], p["ln_b"], p["wqkv"], p["wo"], p["bo"])


def _ffn_gate_block(y, x_in, ffn_p, w_gate, out_g, out_b, *, eps, tm,
                    vmem_limit_bytes, apply_out_ln):
    B, S, D = y.shape
    inner = ffn_p["w1"].shape[1]
    M = B * S

    tm = _choose_tm(M, tm)
    n_tiles = pl.cdiv(M, tm)
    m_pad = n_tiles * tm

    y2 = y.reshape(M, D)
    x2 = x_in.reshape(M, D)
    if m_pad != M:
        # Only hit when B*S is not a multiple of 8 (rare).
        # TODO(synk): handle the ragged tail with an in-kernel masked store instead of padding.
        pad = ((0, m_pad - M), (0, 0))
        y2 = jnp.pad(y2, pad)
        x2 = jnp.pad(x2, pad)

    sb = _single_buffer_supported()
    kernel = functools.partial(_ffn_gate_kernel, eps=eps, apply_out_ln=apply_out_ln)

    out2 = pl.pallas_call(
        kernel,
        out_shape=jax.ShapeDtypeStruct((m_pad, D), y.dtype),
        grid_spec=pltpu.PrefetchScalarGridSpec(
            num_scalar_prefetch=0,
            grid=(n_tiles,),
            in_specs=[
                pl.BlockSpec((tm, D), lambda i: (i, 0)),   # y row tile (post-attn residual)
                pl.BlockSpec((tm, D), lambda i: (i, 0)),   # x_in row tile (gate source)
                _const_spec((1, D), sb),                   # LN gamma
                _const_spec((1, D), sb),                   # LN beta
                _const_spec((D, inner), sb),               # W1 (compute dtype)
                _const_spec((1, inner), sb),               # b1
                _const_spec((inner, D), sb),               # W2 (compute dtype)
                _const_spec((1, D), sb),                   # b2
                _const_spec((1, D), sb),                   # w_gate
                _const_spec((1, D), sb),                   # norm_out gamma (last layer only)
                _const_spec((1, D), sb),                   # norm_out beta  (last layer only)
            ],
            out_specs=pl.BlockSpec((tm, D), lambda i: (i, 0)),
        ),
        compiler_params=pltpu.CompilerParams(
            dimension_semantics=("parallel",),
            vmem_limit_bytes=vmem_limit_bytes,
        ),
    )(y2, x2,
      ffn_p["ln_g"], ffn_p["ln_b"],
      ffn_p["w1"], ffn_p["b1"], ffn_p["w2"], ffn_p["b2"],
      w_gate, out_g, out_b)

    if m_pad != M:
        out2 = out2[:M]
    return out2.reshape(B, S, D)


def prepare_params(params, compute_dtype=jnp.bfloat16):
    """One-time HBM-side prep: fuse QKV, pre-cast matmul weights to compute_dtype,
    reshape 1-D params to (1, D) rows. Call once and reuse across forward calls."""
    dim = params["out_g"].shape[0]
    layers = []
    for layer in params["layers"]:
        ap, fp = layer["attn"], layer["ffn"]
        inner = fp["w1"].shape[1]
        attn = dict(
            ln_g=ap["ln_g"].reshape(1, dim),
            ln_b=ap["ln_b"].reshape(1, dim),
            wqkv=jnp.concatenate([ap["wq"], ap["wk"], ap["wv"]], axis=1).astype(compute_dtype),
            wo=ap["wo"].astype(compute_dtype),
            bo=ap["bo"].reshape(1, dim),
        )
        ffn = dict(
            ln_g=fp["ln_g"].reshape(1, dim),
            ln_b=fp["ln_b"].reshape(1, dim),
            w1=fp["w1"].astype(compute_dtype),
            b1=fp["b1"].reshape(1, inner),
            w2=fp["w2"].astype(compute_dtype),
            b2=fp["b2"].reshape(1, dim),
        )
        layers.append(dict(attn=attn, ffn=ffn, w_gate=layer["w_gate"].reshape(1, dim)))
    return dict(layers=layers,
                out_g=params["out_g"].reshape(1, dim),
                out_b=params["out_b"].reshape(1, dim))


def base_transformer_gate_forward(x, kparams, *, num_heads, eps=1e-5,
                                  tm=None, vmem_limit_bytes=None):
    """Full BaseTransformer_gate forward (eval mode). x: (B, S, D) float32.
    kparams must come from prepare_params() (weights pre-cast to the compute dtype)."""
    d_tm, d_vmem = _default_tiling()
    tm = d_tm if tm is None else tm
    vmem_limit_bytes = d_vmem if vmem_limit_bytes is None else vmem_limit_bytes

    layers = kparams["layers"]
    if not layers:
        raise ValueError("depth must be >= 1 (norm_out is fused into the last layer kernel)")

    n_layers = len(layers)
    for li, layer in enumerate(layers):
        # y = Attention(x) + x        (gate z is computed from x inside the FFN kernel)
        y = _attention_block(x, layer["attn"], num_heads=num_heads, eps=eps,
                             vmem_limit_bytes=vmem_limit_bytes)
        # x = (FFN(y) + y) * sigmoid(x @ w_gate), plus norm_out fused on the last layer
        x = _ffn_gate_block(y, x, layer["ffn"], layer["w_gate"],
                            kparams["out_g"], kparams["out_b"],
                            eps=eps, tm=tm, vmem_limit_bytes=vmem_limit_bytes,
                            apply_out_ln=(li == n_layers - 1))
    return x


# ----------------------------------------------------------------------------
# Pure-JAX reference (mirrors the PyTorch module) and parameter construction
# ----------------------------------------------------------------------------
def _ln_ref(x, g, b, eps=1e-5):
    mean = jnp.mean(x, axis=-1, keepdims=True)
    var = jnp.mean((x - mean) ** 2, axis=-1, keepdims=True)
    return (x - mean) * jax.lax.rsqrt(var + eps) * g + b


def reference_forward(x, params, num_heads, eps=1e-5):
    for layer in params["layers"]:
        ap, fp, wg = layer["attn"], layer["ffn"], layer["w_gate"]
        B, S, D = x.shape
        dh = D // num_heads
        z = jax.nn.sigmoid(jnp.einsum("bsd,d->bs", x, wg))[..., None]
        # attention
        xn = _ln_ref(x, ap["ln_g"], ap["ln_b"], eps)
        q, k, v = xn @ ap["wq"], xn @ ap["wk"], xn @ ap["wv"]
        split = lambda t: t.reshape(B, S, num_heads, dh).transpose(0, 2, 1, 3)
        qh, kh, vh = split(q), split(k), split(v)
        scores = jnp.einsum("bhid,bhjd->bhij", qh, kh) * (dh ** -0.5)
        attn = jax.nn.softmax(scores, axis=-1)
        o = jnp.einsum("bhij,bhjd->bhid", attn, vh)
        o = o.transpose(0, 2, 1, 3).reshape(B, S, D)
        x = (o @ ap["wo"] + ap["bo"]) + x
        # FFN
        yn = _ln_ref(x, fp["ln_g"], fp["ln_b"], eps)
        h = jax.nn.gelu(yn @ fp["w1"] + fp["b1"], approximate=False)
        x = (h @ fp["w2"] + fp["b2"]) + x
        x = x * z
    return _ln_ref(x, params["out_g"], params["out_b"], eps)


def init_params(key, dim, depth, ff_mult):
    """Synthetic parameters; Linear weights stored pre-transposed as (in, out)."""
    inner = dim * ff_mult

    def norm(kk, shape, scale):
        return jax.random.normal(kk, shape, jnp.float32) * scale

    layer_keys = jax.random.split(key, depth + 1)
    layers = []
    for lk in layer_keys[:depth]:
        ks = jax.random.split(lk, 14)
        attn = dict(
            ln_g=1.0 + 0.1 * norm(ks[0], (dim,), 1.0),
            ln_b=0.1 * norm(ks[1], (dim,), 1.0),
            wq=norm(ks[2], (dim, dim), dim ** -0.5),
            wk=norm(ks[3], (dim, dim), dim ** -0.5),
            wv=norm(ks[4], (dim, dim), dim ** -0.5),
            wo=norm(ks[5], (dim, dim), dim ** -0.5),
            bo=norm(ks[6], (dim,), 0.02),
        )
        ffn = dict(
            ln_g=1.0 + 0.1 * norm(ks[7], (dim,), 1.0),
            ln_b=0.1 * norm(ks[8], (dim,), 1.0),
            w1=norm(ks[9], (dim, inner), dim ** -0.5),
            b1=norm(ks[10], (inner,), 0.02),
            w2=norm(ks[11], (inner, dim), inner ** -0.5),
            b2=norm(ks[12], (dim,), 0.02),
        )
        w_gate = norm(ks[13], (dim,), dim ** -0.5)
        layers.append(dict(attn=attn, ffn=ffn, w_gate=w_gate))

    kg, kb = jax.random.split(layer_keys[depth])
    return dict(layers=layers,
                out_g=1.0 + 0.1 * norm(kg, (dim,), 1.0),
                out_b=0.1 * norm(kb, (dim,), 1.0))


# ----------------------------------------------------------------------------
# Self-test
# ----------------------------------------------------------------------------
if __name__ == "__main__":
    B, S, D = 2, 8, 32
    NUM_HEADS, DEPTH, FF_MULT = 4, 2, 4

    key = jax.random.PRNGKey(0)
    kx, kp = jax.random.split(key)
    x = jax.random.normal(kx, (B, S, D), dtype=jnp.float32)
    params = init_params(kp, D, DEPTH, FF_MULT)

    ref = reference_forward(x, params, NUM_HEADS)

    # Strict check: f32 compute path (weights kept in f32).
    kparams_f32 = prepare_params(params, compute_dtype=jnp.float32)
    out_f32 = base_transformer_gate_forward(x, kparams_f32, num_heads=NUM_HEADS)
    out_f32 = jax.block_until_ready(out_f32)
    assert out_f32.shape == (B, S, D)
    assert jnp.allclose(out_f32, ref, atol=1e-3, rtol=1e-3), "f32 kernel mismatch vs reference"

    # Performance path: weights pre-cast to bf16 in HBM, f32 MXU accumulation (loose tolerance).
    kparams_bf16 = prepare_params(params, compute_dtype=jnp.bfloat16)
    out_bf16 = base_transformer_gate_forward(x, kparams_bf16, num_heads=NUM_HEADS)
    out_bf16 = jax.block_until_ready(out_bf16)
    max_err = float(jnp.max(jnp.abs(out_bf16 - ref)))
    assert max_err < 0.5, f"bf16 kernel deviates too much from reference: {max_err}"

    print("KERNEL_OK")
</pallas_src>

<mosaic_0001>
module attributes {stable_mosaic.version = 11 : i64} {
  func.func @_probe(%arg0: i32, %arg1: memref<8x128xf32, #tpu.memory_space<vmem>>, %arg2: memref<8x128xf32, #tpu.memory_space<vmem>>, %arg3: memref<8x128xf32, #tpu.memory_space<vmem>>) attributes {dimension_semantics = [#tpu.dimension_semantics<arbitrary>], iteration_bounds = array<i64: 2>, scalar_prefetch = 0 : i64, scratch_operands = 0 : i64, tpu.core_type = #tpu.core_type<tc>, window_params = [{transform_indices = @transform_0, window_bounds = array<i64: 8, 128>}, {pipeline_mode = #tpu.pipeline_mode<synchronous>, transform_indices = @transform_1, window_bounds = array<i64: 8, 128>}, {transform_indices = @transform_2, window_bounds = array<i64: 8, 128>}]} {
    %c0 = arith.constant 0 : index
    %c0_0 = arith.constant 0 : index
    %0 = vector.load %arg1[%c0, %c0_0] : memref<8x128xf32, #tpu.memory_space<vmem>>, vector<8x128xf32>
    %c0_1 = arith.constant 0 : index
    %c0_2 = arith.constant 0 : index
    %1 = vector.load %arg2[%c0_1, %c0_2] : memref<8x128xf32, #tpu.memory_space<vmem>>, vector<8x128xf32>
    %2 = arith.addf %0, %1 : vector<8x128xf32>
    %c0_3 = arith.constant 0 : index
    %c0_4 = arith.constant 0 : index
    %3 = vector.load %arg3[%c0_3, %c0_4] : memref<8x128xf32, #tpu.memory_space<vmem>>, vector<8x128xf32>
    tpu.vector_store %arg3[%c0_3, %c0_4], %2 {strides = array<i32>} : memref<8x128xf32, #tpu.memory_space<vmem>>, vector<8x128xf32>,
    return
  }
  func.func @transform_0(%arg0: i32) -> (i32, i32) {
    %c0_i32 = arith.constant 0 : i32
    %c0_i32_0 = arith.constant 0 : i32
    return %arg0, %c0_i32 : i32, i32
  }
  func.func @transform_1(%arg0: i32) -> (i32, i32) {
    %c0_i32 = arith.constant 0 : i32
    %c0_i32_0 = arith.constant 0 : i32
    %c0_i32_1 = arith.constant 0 : i32
    return %c0_i32, %c0_i32_0 : i32, i32
  }
  func.func @transform_2(%arg0: i32) -> (i32, i32) {
    %c0_i32 = arith.constant 0 : i32
    %c0_i32_0 = arith.constant 0 : i32
    return %arg0, %c0_i32 : i32, i32
  }
}

module attributes {stable_mosaic.version = 11 : i64} {
  func.func @_attention_kernel(%arg0: i32, %arg1: memref<1x8x32xf32, #tpu.memory_space<vmem>>, %arg2: memref<1x32xf32, #tpu.memory_space<vmem>>, %arg3: memref<1x32xf32, #tpu.memory_space<vmem>>, %arg4: memref<32x96xf32, #tpu.memory_space<vmem>>, %arg5: memref<32x32xf32, #tpu.memory_space<vmem>>, %arg6: memref<1x32xf32, #tpu.memory_space<vmem>>, %arg7: memref<1x8x32xf32, #tpu.memory_space<vmem>>) attributes {dimension_semantics = [#tpu.dimension_semantics<parallel>], iteration_bounds = array<i64: 2>, scalar_prefetch = 0 : i64, scratch_operands = 0 : i64, tpu.core_type = #tpu.core_type<tc>, window_params = [{transform_indices = @transform_0, window_bounds = array<i64: 1, 8, 32>}, {pipeline_mode = #tpu.pipeline_mode<synchronous>, transform_indices = @transform_1, window_bounds = array<i64: 1, 32>}, {pipeline_mode = #tpu.pipeline_mode<synchronous>, transform_indices = @transform_2, window_bounds = array<i64: 1, 32>}, {pipeline_mode = #tpu.pipeline_mode<synchronous>, transform_indices = @transform_3, window_bounds = array<i64: 32, 96>}, {pipeline_mode = #tpu.pipeline_mode<synchronous>, transform_indices = @transform_4, window_bounds = array<i64: 32, 32>}, {pipeline_mode = #tpu.pipeline_mode<synchronous>, transform_indices = @transform_5, window_bounds = array<i64: 1, 32>}, {transform_indices = @transform_6, window_bounds = array<i64: 1, 8, 32>}]} {
    %c0 = arith.constant 0 : index
    %c0_0 = arith.constant 0 : index
    %c0_1 = arith.constant 0 : index
    %0 = vector.load %arg1[%c0, %c0_0, %c0_1] : memref<1x8x32xf32, #tpu.memory_space<vmem>>, vector<1x8x32xf32>
    %1 = vector.shape_cast %0 : vector<1x8x32xf32> to vector<8x32xf32>
    %cst = arith.constant dense<0.000000e+00> : vector<8xf32>
    %2 = vector.multi_reduction <add>, %1, %cst [1] : vector<8x32xf32> to vector<8xf32>
    %3 = vector.shape_cast %2 : vector<8xf32> to vector<8x1xf32>
    %cst_2 = arith.constant 3.200000e+01 : f32
    %4 = vector.broadcast %cst_2 : f32 to vector<8x1xf32>
    %5 = arith.divf %3, %4 : vector<8x1xf32>
    %6 = vector.broadcast %5 : vector<8x1xf32> to vector<8x32xf32>
    %7 = arith.subf %1, %6 : vector<8x32xf32>
    %8 = arith.mulf %7, %7 : vector<8x32xf32>
    %cst_3 = arith.constant dense<0.000000e+00> : vector<8xf32>
    %9 = vector.multi_reduction <add>, %8, %cst_3 [1] : vector<8x32xf32> to vector<8xf32>
    %10 = vector.shape_cast %9 : vector<8xf32> to vector<8x1xf32>
    %cst_4 = arith.constant 3.200000e+01 : f32
    %11 = vector.broadcast %cst_4 : f32 to vector<8x1xf32>
    %12 = arith.divf %10, %11 : vector<8x1xf32>
    %cst_5 = arith.constant 9.99999974E-6 : f32
    %13 = vector.broadcast %cst_5 : f32 to vector<8x1xf32>
    %14 = arith.addf %12, %13 : vector<8x1xf32>
    %15 = math.rsqrt %14 : vector<8x1xf32>
    %16 = vector.broadcast %15 : vector<8x1xf32> to vector<8x32xf32>
    %17 = arith.mulf %7, %16 : vector<8x32xf32>
    %c0_6 = arith.constant 0 : index
    %c0_7 = arith.constant 0 : index
    %18 = vector.load %arg2[%c0_6, %c0_7] : memref<1x32xf32, #tpu.memory_space<vmem>>, vector<1x32xf32>
    %19 = vector.broadcast %18 : vector<1x32xf32> to vector<8x32xf32>
    %20 = arith.mulf %17, %19 : vector<8x32xf32>
    %c0_8 = arith.constant 0 : index
    %c0_9 = arith.constant 0 : index
    %21 = vector.load %arg3[%c0_8, %c0_9] : memref<1x32xf32, #tpu.memory_space<vmem>>, vector<1x32xf32>
    %22 = vector.broadcast %21 : vector<1x32xf32> to vector<8x32xf32>
    %23 = arith.addf %20, %22 : vector<8x32xf32>
    %c0_10 = arith.constant 0 : index
    %c0_11 = arith.constant 0 : index
    %24 = vector.load %arg4[%c0_10, %c0_11] : memref<32x96xf32, #tpu.memory_space<vmem>>, vector<32x96xf32>
    %cst_12 = arith.constant dense<0.000000e+00> : vector<8x96xf32>
    %25 = tpu.matmul %23, %24, %cst_12 {dimension_numbers = #tpu.dot_dimension_numbers<[1], [0], [0], [1], [0, 0, 1, 1], [], []>} : vector<8x32xf32>, vector<32x96xf32>, vector<8x96xf32> -> vector<8x96xf32>
    %26 = vector.extract_strided_slice %25 {offsets = [0, 0], sizes = [8, 32], strides = [1, 1]} : vector<8x96xf32> to vector<8x32xf32>
    %27 = vector.extract_strided_slice %25 {offsets = [0, 32], sizes = [8, 32], strides = [1, 1]} : vector<8x96xf32> to vector<8x32xf32>
    %28 = vector.extract_strided_slice %25 {offsets = [0, 64], sizes = [8, 32], strides = [1, 1]} : vector<8x96xf32> to vector<8x32xf32>
    %29 = vector.extract_strided_slice %26 {offsets = [0, 0], sizes = [8, 8], strides = [1, 1]} : vector<8x32xf32> to vector<8x8xf32>
    %30 = vector.extract_strided_slice %27 {offsets = [0, 0], sizes = [8, 8], strides = [1, 1]} : vector<8x32xf32> to vector<8x8xf32>
    %31 = vector.extract_strided_slice %28 {offsets = [0, 0], sizes = [8, 8], strides = [1, 1]} : vector<8x32xf32> to vector<8x8xf32>
    %cst_13 = arith.constant dense<0.000000e+00> : vector<8x8xf32>
    %32 = tpu.matmul %29, %30, %cst_13 {dimension_numbers = #tpu.dot_dimension_numbers<[1], [1], [0], [0], [0, 0, 1, 0], [], []>} : vector<8x8xf32>, vector<8x8xf32>, vector<8x8xf32> -> vector<8x8xf32>
    %cst_14 = arith.constant 0.353553385 : f32
    %33 = vector.broadcast %cst_14 : f32 to vector<8x8xf32>
    %34 = arith.mulf %32, %33 : vector<8x8xf32>
    %cst_15 = arith.constant dense<0xFF800000> : vector<8xf32>
    %35 = vector.multi_reduction <maximumf>, %34, %cst_15 [1] : vector<8x8xf32> to vector<8xf32>
    %36 = vector.shape_cast %35 : vector<8xf32> to vector<8x1xf32>
    %37 = vector.broadcast %36 : vector<8x1xf32> to vector<8x8xf32>
    %38 = arith.subf %34, %37 : vector<8x8xf32>
    %39 = math.exp %38 : vector<8x8xf32>
    %cst_16 = arith.constant dense<0.000000e+00> : vector<8xf32>
    %40 = vector.multi_reduction <add>, %39, %cst_16 [1] : vector<8x8xf32> to vector<8xf32>
    %41 = vector.shape_cast %40 : vector<8xf32> to vector<8x1xf32>
    %42 = vector.broadcast %41 : vector<8x1xf32> to vector<8x8xf32>
    %43 = arith.divf %39, %42 : vector<8x8xf32>
    %cst_17 = arith.constant dense<0.000000e+00> : vector<8x8xf32>
    %44 = tpu.matmul %43, %31, %cst_17 {dimension_numbers = #tpu.dot_dimension_numbers<[1], [0], [0], [1], [0, 0, 1, 1], [], []>} : vector<8x8xf32>, vector<8x8xf32>, vector<8x8xf32> -> vector<8x8xf32>
    %45 = vector.extract_strided_slice %26 {offsets = [0, 8], sizes = [8, 8], strides = [1, 1]} : vector<8x32xf32> to vector<8x8xf32>
    %46 = vector.extract_strided_slice %27 {offsets = [0, 8], sizes = [8, 8], strides = [1, 1]} : vector<8x32xf32> to vector<8x8xf32>
    %47 = vector.extract_strided_slice %28 {offsets = [0, 8], sizes = [8, 8], strides = [1, 1]} : vector<8x32xf32> to vector<8x8xf32>
    %cst_18 = arith.constant dense<0.000000e+00> : vector<8x8xf32>
    %48 = tpu.matmul %45, %46, %cst_18 {dimension_numbers = #tpu.dot_dimension_numbers<[1], [1], [0], [0], [0, 0, 1, 0], [], []>} : vector<8x8xf32>, vector<8x8xf32>, vector<8x8xf32> -> vector<8x8xf32>
    %cst_19 = arith.constant 0.353553385 : f32
    %49 = vector.broadcast %cst_19 : f32 to vector<8x8xf32>
    %50 = arith.mulf %48, %49 : vector<8x8xf32>
    %cst_20 = arith.constant dense<0xFF800000> : vector<8xf32>
    %51 = vector.multi_reduction <maximumf>, %50, %cst_20 [1] : vector<8x8xf32> to vector<8xf32>
    %52 = vector.shape_cast %51 : vector<8xf32> to vector<8x1xf32>
    %53 = vector.broadcast %52 : vector<8x1xf32> to vector<8x8xf32>
    %54 = arith.subf %50, %53 : vector<8x8xf32>
    %55 = math.exp %54 : vector<8x8xf32>
    %cst_21 = arith.constant dense<0.000000e+00> : vector<8xf32>
    %56 = vector.multi_reduction <add>, %55, %cst_21 [1] : vector<8x8xf32> to vector<8xf32>
    %57 = vector.shape_cast %56 : vector<8xf32> to vector<8x1xf32>
    %58 = vector.broadcast %57 : vector<8x1xf32> to vector<8x8xf32>
    %59 = arith.divf %55, %58 : vector<8x8xf32>
    %cst_22 = arith.constant dense<0.000000e+00> : vector<8x8xf32>
    %60 = tpu.matmul %59, %47, %cst_22 {dimension_numbers = #tpu.dot_dimension_numbers<[1], [0], [0], [1], [0, 0, 1, 1], [], []>} : vector<8x8xf32>, vector<8x8xf32>, vector<8x8xf32> -> vector<8x8xf32>
    %61 = vector.extract_strided_slice %26 {offsets = [0, 16], sizes = [8, 8], strides = [1, 1]} : vector<8x32xf32> to vector<8x8xf32>
    %62 = vector.extract_strided_slice %27 {offsets = [0, 16], sizes = [8, 8], strides = [1, 1]} : vector<8x32xf32> to vector<8x8xf32>
    %63 = vector.extract_strided_slice %28 {offsets = [0, 16], sizes = [8, 8], strides = [1, 1]} : vector<8x32xf32> to vector<8x8xf32>
    %cst_23 = arith.constant dense<0.000000e+00> : vector<8x8xf32>
    %64 = tpu.matmul %61, %62, %cst_23 {dimension_numbers = #tpu.dot_dimension_numbers<[1], [1], [0], [0], [0, 0, 1, 0], [], []>} : vector<8x8xf32>, vector<8x8xf32>, vector<8x8xf32> -> vector<8x8xf32>
    %cst_24 = arith.constant 0.353553385 : f32
    %65 = vector.broadcast %cst_24 : f32 to vector<8x8xf32>
    %66 = arith.mulf %64, %65 : vector<8x8xf32>
    %cst_25 = arith.constant dense<0xFF800000> : vector<8xf32>
    %67 = vector.multi_reduction <maximumf>, %66, %cst_25 [1] : vector<8x8xf32> to vector<8xf32>
    %68 = vector.shape_cast %67 : vector<8xf32> to vector<8x1xf32>
    %69 = vector.broadcast %68 : vector<8x1xf32> to vector<8x8xf32>
    %70 = arith.subf %66, %69 : vector<8x8xf32>
    %71 = math.exp %70 : vector<8x8xf32>
    %cst_26 = arith.constant dense<0.000000e+00> : vector<8xf32>
    %72 = vector.multi_reduction <add>, %71, %cst_26 [1] : vector<8x8xf32> to vector<8xf32>
    %73 = vector.shape_cast %72 : vector<8xf32> to vector<8x1xf32>
    %74 = vector.broadcast %73 : vector<8x1xf32> to vector<8x8xf32>
    %75 = arith.divf %71, %74 : vector<8x8xf32>
    %cst_27 = arith.constant dense<0.000000e+00> : vector<8x8xf32>
    %76 = tpu.matmul %75, %63, %cst_27 {dimension_numbers = #tpu.dot_dimension_numbers<[1], [0], [0], [1], [0, 0, 1, 1], [], []>} : vector<8x8xf32>, vector<8x8xf32>, vector<8x8xf32> -> vector<8x8xf32>
    %77 = vector.extract_strided_slice %26 {offsets = [0, 24], sizes = [8, 8], strides = [1, 1]} : vector<8x32xf32> to vector<8x8xf32>
    %78 = vector.extract_strided_slice %27 {offsets = [0, 24], sizes = [8, 8], strides = [1, 1]} : vector<8x32xf32> to vector<8x8xf32>
    %79 = vector.extract_strided_slice %28 {offsets = [0, 24], sizes = [8, 8], strides = [1, 1]} : vector<8x32xf32> to vector<8x8xf32>
    %cst_28 = arith.constant dense<0.000000e+00> : vector<8x8xf32>
    %80 = tpu.matmul %77, %78, %cst_28 {dimension_numbers = #tpu.dot_dimension_numbers<[1], [1], [0], [0], [0, 0, 1, 0], [], []>} : vector<8x8xf32>, vector<8x8xf32>, vector<8x8xf32> -> vector<8x8xf32>
    %cst_29 = arith.constant 0.353553385 : f32
    %81 = vector.broadcast %cst_29 : f32 to vector<8x8xf32>
    %82 = arith.mulf %80, %81 : vector<8x8xf32>
    %cst_30 = arith.constant dense<0xFF800000> : vector<8xf32>
    %83 = vector.multi_reduction <maximumf>, %82, %cst_30 [1] : vector<8x8xf32> to vector<8xf32>
    %84 = vector.shape_cast %83 : vector<8xf32> to vector<8x1xf32>
    %85 = vector.broadcast %84 : vector<8x1xf32> to vector<8x8xf32>
    %86 = arith.subf %82, %85 : vector<8x8xf32>
    %87 = math.exp %86 : vector<8x8xf32>
    %cst_31 = arith.constant dense<0.000000e+00> : vector<8xf32>
    %88 = vector.multi_reduction <add>, %87, %cst_31 [1] : vector<8x8xf32> to vector<8xf32>
    %89 = vector.shape_cast %88 : vector<8xf32> to vector<8x1xf32>
    %90 = vector.broadcast %89 : vector<8x1xf32> to vector<8x8xf32>
    %91 = arith.divf %87, %90 : vector<8x8xf32>
    %cst_32 = arith.constant dense<0.000000e+00> : vector<8x8xf32>
    %92 = tpu.matmul %91, %79, %cst_32 {dimension_numbers = #tpu.dot_dimension_numbers<[1], [0], [0], [1], [0, 0, 1, 1], [], []>} : vector<8x8xf32>, vector<8x8xf32>, vector<8x8xf32> -> vector<8x8xf32>
    %93 = tpu.concatenate %44, %60, %76, %92 in 1 : vector<8x8xf32>, vector<8x8xf32>, vector<8x8xf32>, vector<8x8xf32> -> vector<8x32xf32>
    %c0_33 = arith.constant 0 : index
    %c0_34 = arith.constant 0 : index
    %94 = vector.load %arg5[%c0_33, %c0_34] : memref<32x32xf32, #tpu.memory_space<vmem>>, vector<32x32xf32>
    %cst_35 = arith.constant dense<0.000000e+00> : vector<8x32xf32>
    %95 = tpu.matmul %93, %94, %cst_35 {dimension_numbers = #tpu.dot_dimension_numbers<[1], [0], [0], [1], [0, 0, 1, 1], [], []>} : vector<8x32xf32>, vector<32x32xf32>, vector<8x32xf32> -> vector<8x32xf32>
    %c0_36 = arith.constant 0 : index
    %c0_37 = arith.constant 0 : index
    %96 = vector.load %arg6[%c0_36, %c0_37] : memref<1x32xf32, #tpu.memory_space<vmem>>, vector<1x32xf32>
    %97 = vector.broadcast %96 : vector<1x32xf32> to vector<8x32xf32>
    %98 = arith.addf %95, %97 : vector<8x32xf32>
    %99 = arith.addf %98, %1 : vector<8x32xf32>
    %c0_38 = arith.constant 0 : index
    %c0_39 = arith.constant 0 : index
    %c0_40 = arith.constant 0 : index
    %100 = vector.load %arg7[%c0_38, %c0_39, %c0_40] : memref<1x8x32xf32, #tpu.memory_space<vmem>>, vector<1x8x32xf32>
    %101 = vector.shape_cast %100 : vector<1x8x32xf32> to vector<8x32xf32>
    %102 = vector.shape_cast %99 : vector<8x32xf32> to vector<1x8x32xf32>
    tpu.vector_store %arg7[%c0_38, %c0_39, %c0_40], %102 {strides = array<i32>} : memref<1x8x32xf32, #tpu.memory_space<vmem>>, vector<1x8x32xf32>,
    return
  }
  func.func @transform_0(%arg0: i32) -> (i32, i32, i32) {
    %c0_i32 = arith.constant 0 : i32
    %c0_i32_0 = arith.constant 0 : i32
    %c0_i32_1 = arith.constant 0 : i32
    return %arg0, %c0_i32, %c0_i32_0 : i32, i32, i32
  }
  func.func @transform_1(%arg0: i32) -> (i32, i32) {
    %c0_i32 = arith.constant 0 : i32
    %c0_i32_0 = arith.constant 0 : i32
    %c0_i32_1 = arith.constant 0 : i32
    return %c0_i32, %c0_i32_0 : i32, i32
  }
  func.func @transform_2(%arg0: i32) -> (i32, i32) {
    %c0_i32 = arith.constant 0 : i32
    %c0_i32_0 = arith.constant 0 : i32
    %c0_i32_1 = arith.constant 0 : i32
    return %c0_i32, %c0_i32_0 : i32, i32
  }
  func.func @transform_3(%arg0: i32) -> (i32, i32) {
    %c0_i32 = arith.constant 0 : i32
    %c0_i32_0 = arith.constant 0 : i32
    %c0_i32_1 = arith.constant 0 : i32
    return %c0_i32, %c0_i32_0 : i32, i32
  }
  func.func @transform_4(%arg0: i32) -> (i32, i32) {
    %c0_i32 = arith.constant 0 : i32
    %c0_i32_0 = arith.constant 0 : i32
    %c0_i32_1 = arith.constant 0 : i32
    return %c0_i32, %c0_i32_0 : i32, i32
  }
  func.func @transform_5(%arg0: i32) -> (i32, i32) {
    %c0_i32 = arith.constant 0 : i32
    %c0_i32_0 = arith.constant 0 : i32
    %c0_i32_1 = arith.constant 0 : i32
    return %c0_i32, %c0_i32_0 : i32, i32
  }
  func.func @transform_6(%arg0: i32) -> (i32, i32, i32) {
    %c0_i32 = arith.constant 0 : i32
    %c0_i32_0 = arith.constant 0 : i32
    %c0_i32_1 = arith.constant 0 : i32
    return %arg0, %c0_i32, %c0_i32_0 : i32, i32, i32
  }
}

</mosaic_0001>

<llo_original>
// kernel: tpu_custom_call.1
$region0: #{tpu_custom_call.1}
  #allocation0 [shape = 'u32[]', space=smem, size = 0x4, offset = 0x4, fixed_abs, tag = 'smem constant byte address 0x4 - core index']
  #allocation1 [shape = 'u32[144,128]{1,0:T(1,128)}', space=vmem, size = 0x12000, scoped, tag = 'internal scratch']
  %s0 = inlined_call_operand.hbm [shape: f32[16,128], index: 0, kind: input, shape index: {}]
  %s1 = inlined_call_operand.hbm [shape: f32[8,128], index: 1, kind: input, shape index: {}]
  %s2 = inlined_call_operand.hbm [shape: f32[16,128], index: 2, kind: output, shape index: {}]
  %s3 = sld [smem:[#allocation0]]
  $region49: #{tpu_custom_call.1} parent=0
    _
  %s5 = ssub.s32 1, %s3
  %s6 = scalar_select 0, %s5, %s3
  $region1: #{tpu_custom_call.1} parent=0
    #allocation2 [shape = 'u8[8192]{0}', space=vmem, size = 0x2000, scoped, tag = 'input window, operand 0']
    #allocation3 [shape = 's32[2]{0}', space=sflag, size = 0x8, scoped, tag = 'scoped memory for tpu_custom_call.1']
    #allocation4 [shape = 's32[2]{0}', space=sflag, size = 0x8, scoped, tag = 'scoped memory for tpu_custom_call.1']
    #allocation5 [shape = 'u8[4096]{0}', space=vmem, size = 0x1000, scoped, tag = 'input window, operand 1, single buffered']
    #allocation6 [shape = 's32[1]{0}', space=sflag, size = 0x4, scoped, tag = 'scoped memory for tpu_custom_call.1']
    #allocation7 [shape = 'u8[8192]{0}', space=vmem, size = 0x2000, scoped, tag = 'output window, operand 0']
    %7 = vsyncpa [#allocation3], 0
    %s8 = scalar_lea.sflag [#allocation3], 1
    %9 = vsyncpa %s8, 0
    %10 = vsyncpa [#allocation6], 0
    %11 = vsyncpa [#allocation4], 0
    %s12 = scalar_lea.sflag [#allocation4], 1
    %13 = vsyncpa %s12, 0
    loop: start=0, step=1, limit=4
    $region2: #{tpu_custom_call.1} parent=1 // loop_pre_header
      _
    $region3: #{tpu_custom_call.1} parent=1 // loop_header
      %s15 = sphi 0, %s19
      %p16 = scmp.ge.s32.totalorder %s15, 4
      %s25 = sphi 0, %s27
      %s28 = sphi 0, %s25
      %s29 = sphi 0, %s28
      %s45 = sphi 0, %s29
      %s49 = sphi 0, %s49
      %s51 = sphi 0, %s49
      %s52 = sphi 0, %s51
      %s66 = sphi 0, %s52
      %s72 = sphi 0, %s74
      %s75 = sphi 0, %s72
      %s76 = sphi 0, %s75
      %s92 = sphi 0, %s76
    $region4: #{tpu_custom_call.1} parent=1 // loop_header_branch
      %18 = sbr.rel (%p16) target = $region8
    $region5: #{tpu_custom_call.1} parent=1 // loop_body
      %s20 = ssub.s32 %s15, 1
      %s21 = ssub.s32 %s15, 2
      %s22 = sadd.s32 %s15, 1
      %s23 = ssub.s32 %s15, %s22
      %p24 = scmp.eq.s32.totalorder %s23, 0
      %s26 = sadd.s32 %s25, 1
      %s27 = scalar_select %p24, %s25, %s26
      %p30 = pneg %p24
      %p31 = scmp.eq.s32.totalorder %s15, 1
      %p32 = por %p30, %p31
      %p33 = scmp.ne.s32.totalorder %s25, %s28
      %p34 = scmp.eq.s32.totalorder %s15, 0
      %p35 = por %p33, %p34
      %p36 = scmp.ne.s32.totalorder %s25, %s28
      %p37 = scmp.eq.s32.totalorder %s20, 1
      %p38 = por %p36, %p37
      %p39 = scmp.ne.s32.totalorder %s28, %s29
      %p40 = scmp.eq.s32.totalorder %s20, 0
      %p41 = por %p39, %p40
      %p42 = scmp.ne.s32.totalorder %s28, %s29
      %p43 = scmp.eq.s32.totalorder %s21, 1
      %p44 = por %p42, %p43
      %p46 = scmp.ne.s32.totalorder %s29, %s45
      %p47 = scmp.eq.s32.totalorder %s21, 0
      %p48 = por %p46, %p47
      %s50 = sadd.s32 %s49, 1
      %p53 = scmp.eq.s32.totalorder %s15, 1
      %p54 = scmp.ne.s32.totalorder %s49, %s51
      %p55 = scmp.eq.s32.totalorder %s15, 0
      %p56 = por %p54, %p55
      %p57 = scmp.ne.s32.totalorder %s49, %s51
      %p58 = scmp.eq.s32.totalorder %s20, 1
      %p59 = por %p57, %p58
      %p60 = scmp.ne.s32.totalorder %s51, %s52
      %p61 = scmp.eq.s32.totalorder %s20, 0
      %p62 = por %p60, %p61
      %p63 = scmp.ne.s32.totalorder %s51, %s52
      %p64 = scmp.eq.s32.totalorder %s21, 1
      %p65 = por %p63, %p64
      %p67 = scmp.ne.s32.totalorder %s52, %s66
      %p68 = scmp.eq.s32.totalorder %s21, 0
      %p69 = por %p67, %p68
      %s70 = ssub.s32 %s15, %s22
      %p71 = scmp.eq.s32.totalorder %s70, 0
      %s73 = sadd.s32 %s72, 1
      %s74 = scalar_select %p71, %s72, %s73
      %p77 = pneg %p71
      %p78 = scmp.eq.s32.totalorder %s15, 1
      %p79 = por %p77, %p78
      %p80 = scmp.ne.s32.totalorder %s72, %s75
      %p81 = scmp.eq.s32.totalorder %s15, 0
      %p82 = por %p80, %p81
      %p83 = scmp.ne.s32.totalorder %s72, %s75
      %p84 = scmp.eq.s32.totalorder %s20, 1
      %p85 = por %p83, %p84
      %p86 = scmp.ne.s32.totalorder %s75, %s76
      %p87 = scmp.eq.s32.totalorder %s20, 0
      %p88 = por %p86, %p87
      %p89 = scmp.ne.s32.totalorder %s75, %s76
      %p90 = scmp.eq.s32.totalorder %s21, 1
      %p91 = por %p89, %p90
      %p93 = scmp.ne.s32.totalorder %s76, %s92
      %p94 = scmp.eq.s32.totalorder %s21, 0
      %p95 = por %p93, %p94
      %p96 = scmp.le.s32.totalorder 1, %s15
      %p97 = scmp.lt.s32.totalorder %s15, 3
      %p98 = pnand %p96, %p97
      %p99 = pneg %p98
      // Predicated region
      $region9: #{tpu_custom_call.1} parent=5 // pred_check
        _
      $region10: #{tpu_custom_call.1} parent=5 // pred_check_branch
        %101 = sbr.rel (%p98) target = $region12
      $region11: #{tpu_custom_call.1} parent=5 // pred_region
        %s102 = ssub.s32 %s15, 1
        // Predicated region
        $region13: #{tpu_custom_call.1} parent=11 // pred_check
          %p103 = pneg %p62
        $region14: #{tpu_custom_call.1} parent=11 // pred_check_branch
          %105 = sbr.rel (%p103) target = $region16
        $region15: #{tpu_custom_call.1} parent=11 // pred_region
          %s107 = ssub.s32 128, 128
          %108 = vsyncadd [#allocation6], %s107
          %s110 = sshll.u32 [#allocation5], 4
          %s111 = int_to_ptr.vmem [resolvable:$true] %s110
          %113 = dma.hbm_to_vmem [thread:$0]  %s1, 128, %s111, [#allocation6]
        $region16: #{tpu_custom_call.1} parent=11 // pred_fallthru
          _
      $region12: #{tpu_custom_call.1} parent=5 // pred_fallthru
        _
      %p114 = scmp.lt.s32.totalorder %s15, 2
      // Predicated region
      $region17: #{tpu_custom_call.1} parent=5 // pred_check
        %p115 = pneg %p114
      $region18: #{tpu_custom_call.1} parent=5 // pred_check_branch
        %117 = sbr.rel (%p115) target = $region20
      $region19: #{tpu_custom_call.1} parent=5 // pred_region
        // Predicated region
        $region21: #{tpu_custom_call.1} parent=19 // pred_check
          %p118 = pneg %p35
        $region22: #{tpu_custom_call.1} parent=19 // pred_check_branch
          %120 = sbr.rel (%p118) target = $region24
        $region23: #{tpu_custom_call.1} parent=19 // pred_region
          %s121 = sand.u32 %s25, 1
          %s122 = scalar_lea.sflag [#allocation3], %s121
          %s123 = sand.u32 %s25, 1
          %s124 = smul.addr %s123, 8
          %s125 = scalar_lea.vmem [#allocation2], %s124
          %s127 = ssub.s32 128, 128
          %128 = vsyncadd %s122, %s127
          %s129 = smul.addr %s15, 128
          %s130 = scalar_lea.hbm %s0, %s129
          %s132 = sshll.u32 %s125, 4
          %s133 = int_to_ptr.vmem [resolvable:$true] %s132
          %135 = dma.hbm_to_vmem [thread:$0]  %s130, 128, %s133, %s122
        $region24: #{tpu_custom_call.1} parent=19 // pred_fallthru
          _
      $region20: #{tpu_custom_call.1} parent=5 // pred_fallthru
        _
      %p136 = scmp.le.s32.totalorder 1, %s15
      %p137 = scmp.lt.s32.totalorder %s15, 3
      %p138 = pnand %p136, %p137
      %p139 = pneg %p138
      // Predicated region
      $region25: #{tpu_custom_call.1} parent=5 // pred_check
        _
      $region26: #{tpu_custom_call.1} parent=5 // pred_check_branch
        %141 = sbr.rel (%p138) target = $region28
      $region27: #{tpu_custom_call.1} parent=5 // pred_region
        %s142 = ssub.s32 %s15, 1
        %s143 = sand.u32 %s28, 1
        %s144 = scalar_lea.sflag [#allocation3], %s143
        %s145 = sand.u32 %s28, 1
        %s146 = smul.addr %s145, 8
        %s147 = scalar_lea.vmem [#allocation2], %s146
        // Predicated region
        $region29: #{tpu_custom_call.1} parent=27 // pred_check
          %p148 = pneg %p41
        $region30: #{tpu_custom_call.1} parent=27 // pred_check_branch
          %150 = sbr.rel (%p148) target = $region32
        $region31: #{tpu_custom_call.1} parent=27 // pred_region
          %151 = dma.done %s144, 128
        $region32: #{tpu_custom_call.1} parent=27 // pred_fallthru
          _
        // Predicated region
        $region33: #{tpu_custom_call.1} parent=27 // pred_check
          %p152 = pneg %p62
        $region34: #{tpu_custom_call.1} parent=27 // pred_check_branch
          %154 = sbr.rel (%p152) target = $region36
        $region35: #{tpu_custom_call.1} parent=27 // pred_region
          %155 = dma.done [#allocation6], 128
        $region36: #{tpu_custom_call.1} parent=27 // pred_fallthru
          _
        %s156 = sand.u32 %s28, 1
        %s157 = scalar_lea.sflag [#allocation3], %s156
        %s158 = sand.u32 %s28, 1
        %s159 = smul.addr %s158, 8
        %s160 = scalar_lea.vmem [#allocation2], %s159
        %p161 = pneg %p41
        %p162 = pneg %p38
        %p163 = pneg %p62
        %p164 = pneg %p59
        %p165 = pneg %p88
        %p166 = pneg %p85
        %s167 = sand.u32 %s75, 1
        %s168 = scalar_lea.sflag [#allocation4], %s167
        %s169 = sand.u32 %s75, 1
        %s170 = smul.addr %s169, 8
        %s171 = scalar_lea.vmem [#allocation7], %s170
        %v172 = vld [vmem:[%s147] sm:$0xff]
        %v173 = vld [vmem:[#allocation5] sm:$0xff]
        %v174 = vadd.f32 %v172, %v173
        %175 = vst [vmem:[%s171] sm:$0xff] %v174
        %s176 = sand.u32 %s75, 1
        %s177 = scalar_lea.sflag [#allocation4], %s176
        %s178 = sand.u32 %s75, 1
        %s179 = smul.addr %s178, 8
        %s180 = scalar_lea.vmem [#allocation7], %s179
        // Predicated region
        $region37: #{tpu_custom_call.1} parent=27 // pred_check
          %p181 = pneg %p85
        $region38: #{tpu_custom_call.1} parent=27 // pred_check_branch
          %183 = sbr.rel (%p181) target = $region40
        $region39: #{tpu_custom_call.1} parent=27 // pred_region
          %s185 = ssub.s32 128, 128
          %186 = vsyncadd %s177, %s185
          %s187 = smul.addr %s20, 128
          %s188 = scalar_lea.hbm %s2, %s187
          %s190 = sshll.u32 %s180, 4
          %s191 = int_to_ptr.vmem [resolvable:$true] %s190
          %193 = dma.vmem_to_hbm [thread:$0]  %s191, 128, %s188, %s177
        $region40: #{tpu_custom_call.1} parent=27 // pred_fallthru
          _
      $region28: #{tpu_custom_call.1} parent=5 // pred_fallthru
        _
      %p194 = scmp.le.s32.totalorder 2, %s15
      // Predicated region
      $region41: #{tpu_custom_call.1} parent=5 // pred_check
        %p195 = pneg %p194
      $region42: #{tpu_custom_call.1} parent=5 // pred_check_branch
        %197 = sbr.rel (%p195) target = $region44
      $region43: #{tpu_custom_call.1} parent=5 // pred_region
        %s198 = ssub.s32 %s15, 2
        // Predicated region
        $region45: #{tpu_custom_call.1} parent=43 // pred_check
          %p199 = pneg %p91
        $region46: #{tpu_custom_call.1} parent=43 // pred_check_branch
          %201 = sbr.rel (%p199) target = $region48
        $region47: #{tpu_custom_call.1} parent=43 // pred_region
          %s202 = sand.u32 %s76, 1
          %s203 = scalar_lea.sflag [#allocation4], %s202
          %s204 = sand.u32 %s76, 1
          %s205 = smul.addr %s204, 8
          %s206 = scalar_lea.vmem [#allocation7], %s205
          %207 = dma.done %s203, 128
        $region48: #{tpu_custom_call.1} parent=43 // pred_fallthru
          _
      $region44: #{tpu_custom_call.1} parent=5 // pred_fallthru
        _
    $region6: #{tpu_custom_call.1} parent=1 // loop_footer
      %s19 = sadd.s32 1, %s15
    $region7: #{tpu_custom_call.1} parent=1 // loop_footer_branch
      %14 = sbr.rel target = $region3
    $region8: #{tpu_custom_call.1} parent=1 // loop_exit
      _
    %208 = vsyncpa [#allocation3], 1
    %s209 = scalar_lea.sflag [#allocation3], 1
    %210 = vsyncpa %s209, 1
    %211 = vsyncpa [#allocation6], 1
    %212 = vsyncpa [#allocation4], 1
    %s213 = scalar_lea.sflag [#allocation4], 1
    %214 = vsyncpa %s213, 1

// kernel: tpu_custom_call.1
$region0: #{tpu_custom_call.1}
  #allocation0 [shape = 'u32[]', space=smem, size = 0x4, offset = 0x4, fixed_abs, tag = 'smem constant byte address 0x4 - core index']
  #allocation1 [shape = 'u32[144,128]{1,0:T(1,128)}', space=vmem, size = 0x12000, scoped, tag = 'internal scratch']
  %s0 = inlined_call_operand.hbm [shape: f32[2,8,32], index: 0, kind: input, shape index: {}]
  %s1 = inlined_call_operand.vmem [shape: f32[1,32], index: 1, kind: input, shape index: {}]
  %s2 = inlined_call_operand.vmem [shape: f32[1,32], index: 2, kind: input, shape index: {}]
  %s3 = inlined_call_operand.hbm [shape: f32[32,96], index: 3, kind: input, shape index: {}]
  %s4 = inlined_call_operand.hbm [shape: f32[32,32], index: 4, kind: input, shape index: {}]
  %s5 = inlined_call_operand.vmem [shape: f32[1,32], index: 5, kind: input, shape index: {}]
  %s6 = inlined_call_operand.hbm [shape: f32[2,8,32], index: 6, kind: output, shape index: {}]
  %s7 = sld [smem:[#allocation0]]
  $region69: #{tpu_custom_call.1} parent=0
    _
  %s9 = ssub.s32 1, %s7
  %s10 = scalar_select 0, %s9, %s7
  $region1: #{tpu_custom_call.1} parent=0
    #allocation2 [shape = 'u8[8192]{0}', space=vmem, size = 0x2000, scoped, tag = 'input window, operand 0']
    #allocation3 [shape = 's32[2]{0}', space=sflag, size = 0x8, scoped, tag = 'scoped memory for tpu_custom_call.1']
    #allocation4 [shape = 's32[2]{0}', space=sflag, size = 0x8, scoped, tag = 'scoped memory for tpu_custom_call.1']
    #allocation5 [shape = 'u8[16384]{0}', space=vmem, size = 0x4000, scoped, tag = 'input window, operand 3, single buffered']
    #allocation6 [shape = 's32[1]{0}', space=sflag, size = 0x4, scoped, tag = 'scoped memory for tpu_custom_call.1']
    #allocation7 [shape = 'u8[16384]{0}', space=vmem, size = 0x4000, scoped, tag = 'input window, operand 4, single buffered']
    #allocation8 [shape = 'u8[8192]{0}', space=vmem, size = 0x2000, scoped, tag = 'output window, operand 0']
    %11 = vsyncpa [#allocation3], 0
    %s12 = scalar_lea.sflag [#allocation3], 1
    %13 = vsyncpa %s12, 0
    %14 = vsyncpa [#allocation6], 0
    %15 = vsyncpa [#allocation4], 0
    %s16 = scalar_lea.sflag [#allocation4], 1
    %17 = vsyncpa %s16, 0
    loop: start=0, step=1, limit=4
    $region2: #{tpu_custom_call.1} parent=1 // loop_pre_header
      _
    $region3: #{tpu_custom_call.1} parent=1 // loop_header
      %s19 = sphi 0, %s23
      %p20 = scmp.ge.s32.totalorder %s19, 4
      %s29 = sphi 0, %s31
      %s32 = sphi 0, %s29
      %s33 = sphi 0, %s32
      %s49 = sphi 0, %s33
      %s53 = sphi 0, %s53
      %s55 = sphi 0, %s53
      %s56 = sphi 0, %s55
      %s70 = sphi 0, %s56
      %s74 = sphi 0, %s74
      %s76 = sphi 0, %s74
      %s77 = sphi 0, %s76
      %s91 = sphi 0, %s77
      %s95 = sphi 0, %s95
      %s97 = sphi 0, %s95
      %s98 = sphi 0, %s97
      %s112 = sphi 0, %s98
      %s116 = sphi 0, %s116
      %s118 = sphi 0, %s116
      %s119 = sphi 0, %s118
      %s133 = sphi 0, %s119
      %s137 = sphi 0, %s137
      %s139 = sphi 0, %s137
      %s140 = sphi 0, %s139
      %s154 = sphi 0, %s140
      %s160 = sphi 0, %s162
      %s163 = sphi 0, %s160
      %s164 = sphi 0, %s163
      %s180 = sphi 0, %s164
    $region4: #{tpu_custom_call.1} parent=1 // loop_header_branch
      %22 = sbr.rel (%p20) target = $region8
    $region5: #{tpu_custom_call.1} parent=1 // loop_body
      %s24 = ssub.s32 %s19, 1
      %s25 = ssub.s32 %s19, 2
      %s26 = sadd.s32 %s19, 1
      %s27 = ssub.s32 %s19, %s26
      %p28 = scmp.eq.s32.totalorder %s27, 0
      %s30 = sadd.s32 %s29, 1
      %s31 = scalar_select %p28, %s29, %s30
      %p34 = pneg %p28
      %p35 = scmp.eq.s32.totalorder %s19, 1
      %p36 = por %p34, %p35
      %p37 = scmp.ne.s32.totalorder %s29, %s32
      %p38 = scmp.eq.s32.totalorder %s19, 0
      %p39 = por %p37, %p38
      %p40 = scmp.ne.s32.totalorder %s29, %s32
      %p41 = scmp.eq.s32.totalorder %s24, 1
      %p42 = por %p40, %p41
      %p43 = scmp.ne.s32.totalorder %s32, %s33
      %p44 = scmp.eq.s32.totalorder %s24, 0
      %p45 = por %p43, %p44
      %p46 = scmp.ne.s32.totalorder %s32, %s33
      %p47 = scmp.eq.s32.totalorder %s25, 1
      %p48 = por %p46, %p47
      %p50 = scmp.ne.s32.totalorder %s33, %s49
      %p51 = scmp.eq.s32.totalorder %s25, 0
      %p52 = por %p50, %p51
      %s54 = sadd.s32 %s53, 1
      %p57 = scmp.eq.s32.totalorder %s19, 1
      %p58 = scmp.ne.s32.totalorder %s53, %s55
      %p59 = scmp.eq.s32.totalorder %s19, 0
      %p60 = por %p58, %p59
      %p61 = scmp.ne.s32.totalorder %s53, %s55
      %p62 = scmp.eq.s32.totalorder %s24, 1
      %p63 = por %p61, %p62
      %p64 = scmp.ne.s32.totalorder %s55, %s56
      %p65 = scmp.eq.s32.totalorder %s24, 0
      %p66 = por %p64, %p65
      %p67 = scmp.ne.s32.totalorder %s55, %s56
      %p68 = scmp.eq.s32.totalorder %s25, 1
      %p69 = por %p67, %p68
      %p71 = scmp.ne.s32.totalorder %s56, %s70
      %p72 = scmp.eq.s32.totalorder %s25, 0
      %p73 = por %p71, %p72
      %s75 = sadd.s32 %s74, 1
      %p78 = scmp.eq.s32.totalorder %s19, 1
      %p79 = scmp.ne.s32.totalorder %s74, %s76
      %p80 = scmp.eq.s32.totalorder %s19, 0
      %p81 = por %p79, %p80
      %p82 = scmp.ne.s32.totalorder %s74, %s76
      %p83 = scmp.eq.s32.totalorder %s24, 1
      %p84 = por %p82, %p83
      %p85 = scmp.ne.s32.totalorder %s76, %s77
      %p86 = scmp.eq.s32.totalorder %s24, 0
      %p87 = por %p85, %p86
      %p88 = scmp.ne.s32.totalorder %s76, %s77
      %p89 = scmp.eq.s32.totalorder %s25, 1
      %p90 = por %p88, %p89
      %p92 = scmp.ne.s32.totalorder %s77, %s91
      %p93 = scmp.eq.s32.totalorder %s25, 0
      %p94 = por %p92, %p93
      %s96 = sadd.s32 %s95, 1
      %p99 = scmp.eq.s32.totalorder %s19, 1
      %p100 = scmp.ne.s32.totalorder %s95, %s97
      %p101 = scmp.eq.s32.totalorder %s19, 0
      %p102 = por %p100, %p101
      %p103 = scmp.ne.s32.totalorder %s95, %s97
      %p104 = scmp.eq.s32.totalorder %s24, 1
      %p105 = por %p103, %p104
      %p106 = scmp.ne.s32.totalorder %s97, %s98
      %p107 = scmp.eq.s32.totalorder %s24, 0
      %p108 = por %p106, %p107
      %p109 = scmp.ne.s32.totalorder %s97, %s98
      %p110 = scmp.eq.s32.totalorder %s25, 1
      %p111 = por %p109, %p110
      %p113 = scmp.ne.s32.totalorder %s98, %s112
      %p114 = scmp.eq.s32.totalorder %s25, 0
      %p115 = por %p113, %p114
      %s117 = sadd.s32 %s116, 1
      %p120 = scmp.eq.s32.totalorder %s19, 1
      %p121 = scmp.ne.s32.totalorder %s116, %s118
      %p122 = scmp.eq.s32.totalorder %s19, 0
      %p123 = por %p121, %p122
      %p124 = scmp.ne.s32.totalorder %s116, %s118
      %p125 = scmp.eq.s32.totalorder %s24, 1
      %p126 = por %p124, %p125
      %p127 = scmp.ne.s32.totalorder %s118, %s119
      %p128 = scmp.eq.s32.totalorder %s24, 0
      %p129 = por %p127, %p128
      %p130 = scmp.ne.s32.totalorder %s118, %s119
      %p131 = scmp.eq.s32.totalorder %s25, 1
      %p132 = por %p130, %p131
      %p134 = scmp.ne.s32.totalorder %s119, %s133
      %p135 = scmp.eq.s32.totalorder %s25, 0
      %p136 = por %p134, %p135
      %s138 = sadd.s32 %s137, 1
      %p141 = scmp.eq.s32.totalorder %s19, 1
      %p142 = scmp.ne.s32.totalorder %s137, %s139
      %p143 = scmp.eq.s32.totalorder %s19, 0
      %p144 = por %p142, %p143
      %p145 = scmp.ne.s32.totalorder %s137, %s139
      %p146 = scmp.eq.s32.totalorder %s24, 1
      %p147 = por %p145, %p146
      %p148 = scmp.ne.s32.totalorder %s139, %s140
      %p149 = scmp.eq.s32.totalorder %s24, 0
      %p150 = por %p148, %p149
      %p151 = scmp.ne.s32.totalorder %s139, %s140
      %p152 = scmp.eq.s32.totalorder %s25, 1
      %p153 = por %p151, %p152
      %p155 = scmp.ne.s32.totalorder %s140, %s154
      %p156 = scmp.eq.s32.totalorder %s25, 0
      %p157 = por %p155, %p156
      %s158 = ssub.s32 %s19, %s26
      %p159 = scmp.eq.s32.totalorder %s158, 0
      %s161 = sadd.s32 %s160, 1
      %s162 = scalar_select %p159, %s160, %s161
      %p165 = pneg %p159
      %p166 = scmp.eq.s32.totalorder %s19, 1
      %p167 = por %p165, %p166
      %p168 = scmp.ne.s32.totalorder %s160, %s163
      %p169 = scmp.eq.s32.totalorder %s19, 0
      %p170 = por %p168, %p169
      %p171 = scmp.ne.s32.totalorder %s160, %s163
      %p172 = scmp.eq.s32.totalorder %s24, 1
      %p173 = por %p171, %p172
      %p174 = scmp.ne.s32.totalorder %s163, %s164
      %p175 = scmp.eq.s32.totalorder %s24, 0
      %p176 = por %p174, %p175
      %p177 = scmp.ne.s32.totalorder %s163, %s164
      %p178 = scmp.eq.s32.totalorder %s25, 1
      %p179 = por %p177, %p178
      %p181 = scmp.ne.s32.totalorder %s164, %s180
      %p182 = scmp.eq.s32.totalorder %s25, 0
      %p183 = por %p181, %p182
      %p184 = scmp.le.s32.totalorder 1, %s19
      %p185 = scmp.lt.s32.totalorder %s19, 3
      %p186 = pnand %p184, %p185
      %p187 = pneg %p186
      // Predicated region
      $region9: #{tpu_custom_call.1} parent=5 // pred_check
        _
      $region10: #{tpu_custom_call.1} parent=5 // pred_check_branch
        %189 = sbr.rel (%p186) target = $region12
      $region11: #{tpu_custom_call.1} parent=5 // pred_region
        %s190 = ssub.s32 %s19, 1
        // Predicated region
        $region13: #{tpu_custom_call.1} parent=11 // pred_check
          %p191 = pneg %p66
        $region14: #{tpu_custom_call.1} parent=11 // pred_check_branch
          %193 = sbr.rel (%p191) target = $region16
        $region15: #{tpu_custom_call.1} parent=11 // pred_region
          _
        $region16: #{tpu_custom_call.1} parent=11 // pred_fallthru
          _
        // Predicated region
        $region17: #{tpu_custom_call.1} parent=11 // pred_check
          %p194 = pneg %p87
        $region18: #{tpu_custom_call.1} parent=11 // pred_check_branch
          %196 = sbr.rel (%p194) target = $region20
        $region19: #{tpu_custom_call.1} parent=11 // pred_region
          _
        $region20: #{tpu_custom_call.1} parent=11 // pred_fallthru
          _
        // Predicated region
        $region21: #{tpu_custom_call.1} parent=11 // pred_check
          %p197 = pneg %p108
        $region22: #{tpu_custom_call.1} parent=11 // pred_check_branch
          %199 = sbr.rel (%p197) target = $region24
        $region23: #{tpu_custom_call.1} parent=11 // pred_region
          %s201 = ssub.s32 512, 512
          %202 = vsyncadd [#allocation6], %s201
          %s203 = sshll.u32 [#allocation5], 4
          %s204 = int_to_ptr.vmem [resolvable:$true] %s203
          %209 = dma.hbm_to_vmem [thread:$0]  %s3, 512, %s204, [#allocation6], 128, 128, 8
        $region24: #{tpu_custom_call.1} parent=11 // pred_fallthru
          _
        // Predicated region
        $region25: #{tpu_custom_call.1} parent=11 // pred_check
          %p210 = pneg %p129
        $region26: #{tpu_custom_call.1} parent=11 // pred_check_branch
          %212 = sbr.rel (%p210) target = $region28
        $region27: #{tpu_custom_call.1} parent=11 // pred_region
          %s214 = ssub.s32 512, 512
          %215 = vsyncadd [#allocation6], %s214
          %s216 = sshll.u32 [#allocation7], 4
          %s217 = int_to_ptr.vmem [resolvable:$true] %s216
          %222 = dma.hbm_to_vmem [thread:$0]  %s4, 512, %s217, [#allocation6], 128, 128, 8
        $region28: #{tpu_custom_call.1} parent=11 // pred_fallthru
          _
        // Predicated region
        $region29: #{tpu_custom_call.1} parent=11 // pred_check
          %p223 = pneg %p150
        $region30: #{tpu_custom_call.1} parent=11 // pred_check_branch
          %225 = sbr.rel (%p223) target = $region32
        $region31: #{tpu_custom_call.1} parent=11 // pred_region
          _
        $region32: #{tpu_custom_call.1} parent=11 // pred_fallthru
          _
      $region12: #{tpu_custom_call.1} parent=5 // pred_fallthru
        _
      %p226 = scmp.lt.s32.totalorder %s19, 2
      // Predicated region
      $region33: #{tpu_custom_call.1} parent=5 // pred_check
        %p227 = pneg %p226
      $region34: #{tpu_custom_call.1} parent=5 // pred_check_branch
        %229 = sbr.rel (%p227) target = $region36
      $region35: #{tpu_custom_call.1} parent=5 // pred_region
        // Predicated region
        $region37: #{tpu_custom_call.1} parent=35 // pred_check
          %p230 = pneg %p39
        $region38: #{tpu_custom_call.1} parent=35 // pred_check_branch
          %232 = sbr.rel (%p230) target = $region40
        $region39: #{tpu_custom_call.1} parent=35 // pred_region
          %s233 = sand.u32 %s29, 1
          %s234 = scalar_lea.sflag [#allocation3], %s233
          %s235 = sand.u32 %s29, 1
          %s236 = smul.addr %s235, 8
          %s237 = scalar_lea.vmem [#allocation2], %s236
          %s239 = ssub.s32 128, 128
          %240 = vsyncadd %s234, %s239
          %s241 = smul.addr %s19, 128
          %s242 = scalar_lea.hbm %s0, %s241
          %s244 = sshll.u32 %s237, 4
          %s245 = int_to_ptr.vmem [resolvable:$true] %s244
          %247 = dma.hbm_to_vmem [thread:$0]  %s242, 128, %s245, %s234
        $region40: #{tpu_custom_call.1} parent=35 // pred_fallthru
          _
      $region36: #{tpu_custom_call.1} parent=5 // pred_fallthru
        _
      %p248 = scmp.le.s32.totalorder 1, %s19
      %p249 = scmp.lt.s32.totalorder %s19, 3
      %p250 = pnand %p248, %p249
      %p251 = pneg %p250
      // Predicated region
      $region41: #{tpu_custom_call.1} parent=5 // pred_check
        _
      $region42: #{tpu_custom_call.1} parent=5 // pred_check_branch
        %253 = sbr.rel (%p250) target = $region44
      $region43: #{tpu_custom_call.1} parent=5 // pred_region
        %s254 = ssub.s32 %s19, 1
        %s255 = sand.u32 %s32, 1
        %s256 = scalar_lea.sflag [#allocation3], %s255
        %s257 = sand.u32 %s32, 1
        %s258 = smul.addr %s257, 8
        %s259 = scalar_lea.vmem [#allocation2], %s258
        // Predicated region
        $region45: #{tpu_custom_call.1} parent=43 // pred_check
          %p260 = pneg %p45
        $region46: #{tpu_custom_call.1} parent=43 // pred_check_branch
          %262 = sbr.rel (%p260) target = $region48
        $region47: #{tpu_custom_call.1} parent=43 // pred_region
          %263 = dma.done %s256, 128
        $region48: #{tpu_custom_call.1} parent=43 // pred_fallthru
          _
        // Predicated region
        $region49: #{tpu_custom_call.1} parent=43 // pred_check
          %p264 = pneg %p108
        $region50: #{tpu_custom_call.1} parent=43 // pred_check_branch
          %266 = sbr.rel (%p264) target = $region52
        $region51: #{tpu_custom_call.1} parent=43 // pred_region
          %267 = dma.done [#allocation6], 512
        $region52: #{tpu_custom_call.1} parent=43 // pred_fallthru
          _
        // Predicated region
        $region53: #{tpu_custom_call.1} parent=43 // pred_check
          %p268 = pneg %p129
        $region54: #{tpu_custom_call.1} parent=43 // pred_check_branch
          %270 = sbr.rel (%p268) target = $region56
        $region55: #{tpu_custom_call.1} parent=43 // pred_region
          %271 = dma.done [#allocation6], 512
        $region56: #{tpu_custom_call.1} parent=43 // pred_fallthru
          _
        %s272 = sand.u32 %s32, 1
        %s273 = scalar_lea.sflag [#allocation3], %s272
        %s274 = sand.u32 %s32, 1
        %s275 = smul.addr %s274, 8
        %s276 = scalar_lea.vmem [#allocation2], %s275
        %p277 = pneg %p45
        %p278 = pneg %p42
        %p279 = pneg %p66
        %p280 = pneg %p63
        %p281 = pneg %p87
        %p282 = pneg %p84
        %p283 = pneg %p108
        %p284 = pneg %p105
        %p285 = pneg %p129
        %p286 = pneg %p126
        %p287 = pneg %p150
        %p288 = pneg %p147
        %p289 = pneg %p176
        %p290 = pneg %p173
        %s291 = sand.u32 %s163, 1
        %s292 = scalar_lea.sflag [#allocation4], %s291
        %s293 = sand.u32 %s163, 1
        %s294 = smul.addr %s293, 8
        %s295 = scalar_lea.vmem [#allocation8], %s294
        %v296 = vld [vmem:[%s259] sm:$0xff]
        %vm297 = vcmask 261120
        %v298 = vsel %vm297, %v296, 0.0
        %299 = vadd.xlane.f32.xlu0 %v298
        %v300 = vpop.xlane.xlu0 %299
        %v301 = vrcp.pop 32.0
        %v302 = vmul.f32 %v300, %v301
        %v303 = vsub.f32 %v296, %v302
        %v304 = vmul.f32 %v303, %v303
        %v305 = vsel %vm297, %v304, 0.0
        %306 = vadd.xlane.f32.xlu0 %v305
        %v307 = vpop.xlane.xlu0 %306
        %v308 = vmul.f32 %v307, %v301
        %v309 = vadd.f32 %v308, 1e-05
        %v310 = vrsqrt.pop %v309
        %v311 = vmul.f32 %v303, %v310
        %v312 = vld [vmem:[%s1] sm:$0x1]
        %v314 = vlaneseq
        %v315 = vshrl.u32 %v314, 7
        %v316 = vsub.s32 0, %v315
        %v317 = vrot.slane %v312, %v316
        %v319 = vmul.f32 %v311, %v317
        %v320 = vld [vmem:[%s2] sm:$0x1]
        %v322 = vlaneseq
        %v323 = vshrl.u32 %v322, 7
        %v324 = vsub.s32 0, %v323
        %v325 = vrot.slane %v320, %v324
        %v327 = vadd.f32 %v319, %v325
        %v328 = vld [vmem:[#allocation5] sm:$0xff]
        %v329 = vld [vmem:[#allocation5 + $0x8] sm:$0xff]
        %v330 = vld [vmem:[#allocation5 + $0x10] sm:$0xff]
        %v331 = vld [vmem:[#allocation5 + $0x18] sm:$0xff]
        %v333 = vsel %vm297, %v327, 0
        %335 = vmatprep.subr.mxu0 0.0
        %336 = vmatpush1.msra.mxu0 0.0
        %337 = vmatprep.subr.mxu0 0.0
        %338 = vmatpush1.msra.mxu0 0.0
        %339 = vmatprep.subr.mxu0 0.0
        %340 = vmatpush1.msra.mxu0 0.0
        %341 = vmatprep.subr.mxu0 0.0
        %342 = vmatpush1.msra.mxu0 0.0
        %343 = vmatprep.subr.mxu0 0.0
        %344 = vmatpush1.msra.mxu0 0.0
        %345 = vmatprep.subr.mxu0 0.0
        %346 = vmatpush1.msra.mxu0 0.0
        %347 = vmatprep.subr.mxu0 0.0
        %348 = vmatpush1.msra.mxu0 0.0
        %349 = vmatprep.subr.mxu0 0.0
        %350 = vmatpush1.msra.mxu0 0.0
        %351 = vmatprep.subr.mxu0 0.0
        %352 = vmatpush1.msra.mxu0 0.0
        %353 = vmatprep.subr.mxu0 0.0
        %354 = vmatpush1.msra.mxu0 0.0
        %355 = vmatprep.subr.mxu0 0.0
        %356 = vmatpush1.msra.mxu0 0.0
        %357 = vmatprep.subr.mxu0 0.0
        %358 = vmatpush1.msra.mxu0 0.0
        %359 = vmatprep.subr.mxu0 0.0
        %360 = vmatpush1.msra.mxu0 %v331
        %361 = vmatprep.subr.mxu0 0.0
        %362 = vmatpush1.msra.mxu0 %v330
        %363 = vmatprep.subr.mxu0 0.0
        %364 = vmatpush1.msra.mxu0 %v329
        %365 = vmatprep.subr.mxu0 0.0
        %366 = vmatpush1.msra.mxu0 %v328
        %367 = vmatprep.subr.mxu0 0.0
        %368 = vmatpush2.msra.mxu0 0.0
        %369 = vmatprep.subr.mxu0 0.0
        %370 = vmatpush2.msra.mxu0 0.0
        %371 = vmatprep.subr.mxu0 0.0
        %372 = vmatpush2.msra.mxu0 0.0
        %373 = vmatprep.subr.mxu0 0.0
        %374 = vmatpush2.msra.mxu0 0.0
        %375 = vmatprep.subr.mxu0 0.0
        %376 = vmatpush2.msra.mxu0 0.0
        %377 = vmatprep.subr.mxu0 0.0
        %378 = vmatpush2.msra.mxu0 0.0
        %379 = vmatprep.subr.mxu0 0.0
        %380 = vmatpush2.msra.mxu0 0.0
        %381 = vmatprep.subr.mxu0 0.0
        %382 = vmatpush2.msra.mxu0 0.0
        %383 = vmatprep.subr.mxu0 0.0
        %384 = vmatpush2.msra.mxu0 0.0
        %385 = vmatprep.subr.mxu0 0.0
        %386 = vmatpush2.msra.mxu0 0.0
        %387 = vmatprep.subr.mxu0 0.0
        %388 = vmatpush2.msra.mxu0 0.0
        %389 = vmatprep.subr.mxu0 0.0
        %390 = vmatpush2.msra.mxu0 0.0
        %391 = vmatprep.subr.mxu0 0.0
        %392 = vmatpush2.msra.mxu0 0.0
        %393 = vmatprep.subr.mxu0 0.0
        %394 = vmatpush2.msra.mxu0 0.0
        %395 = vmatprep.subr.mxu0 0.0
        %396 = vmatpush2.msra.mxu0 0.0
        %397 = vmatprep.subr.mxu0 0.0
        %398 = vmatpush2.msra.mxu0 0.0
        %399 = vmatprep.mubr.f32.mxu0 0.0
        %400 = vmatmul.mubr.f32.gmra.mxu0 %v333
        %v401 = vpop.f32.mrf.mxu0
        %v402 = vadd.f32 0.0, %v401
        %v403 = vpop.f32.mrf.mxu0
        %404 = vdwg.mxu0
        %406 = vrot.lane.b32.xlu0 %v402, 96
        %v407 = vpop.permute.xlu0 %406
        %vm408 = vcmask 64512
        %v409 = vsel %vm408, %v402, 0
        %v411 = vsel %vm408, %v407, 0
        %413 = vmatprep.subr.mxu0 0.0
        %414 = vmatpush1.xpose.msra.mxu0 0.0
        %415 = vmatprep.subr.mxu0 0.0
        %416 = vmatpush1.xpose.msra.mxu0 0.0
        %417 = vmatprep.subr.mxu0 0.0
        %418 = vmatpush1.xpose.msra.mxu0 0.0
        %419 = vmatprep.subr.mxu0 0.0
        %420 = vmatpush1.xpose.msra.mxu0 0.0
        %421 = vmatprep.subr.mxu0 0.0
        %422 = vmatpush1.xpose.msra.mxu0 0.0
        %423 = vmatprep.subr.mxu0 0.0
        %424 = vmatpush1.xpose.msra.mxu0 0.0
        %425 = vmatprep.subr.mxu0 0.0
        %426 = vmatpush1.xpose.msra.mxu0 0.0
        %427 = vmatprep.subr.mxu0 0.0
        %428 = vmatpush1.xpose.msra.mxu0 0.0
        %429 = vmatprep.subr.mxu0 0.0
        %430 = vmatpush1.xpose.msra.mxu0 0.0
        %431 = vmatprep.subr.mxu0 0.0
        %432 = vmatpush1.xpose.msra.mxu0 0.0
        %433 = vmatprep.subr.mxu0 0.0
        %434 = vmatpush1.xpose.msra.mxu0 0.0
        %435 = vmatprep.subr.mxu0 0.0
        %436 = vmatpush1.xpose.msra.mxu0 0.0
        %437 = vmatprep.subr.mxu0 0.0
        %438 = vmatpush1.xpose.msra.mxu0 0.0
        %439 = vmatprep.subr.mxu0 0.0
        %440 = vmatpush1.xpose.msra.mxu0 0.0
        %441 = vmatprep.subr.mxu0 0.0
        %442 = vmatpush1.xpose.msra.mxu0 0.0
        %443 = vmatprep.subr.mxu0 0.0
        %444 = vmatpush1.xpose.msra.mxu0 %v411
        %445 = vmatprep.subr.mxu0 0.0
        %446 = vmatpush2.xpose.msra.mxu0 0.0
        %447 = vmatprep.subr.mxu0 0.0
        %448 = vmatpush2.xpose.msra.mxu0 0.0
        %449 = vmatprep.subr.mxu0 0.0
        %450 = vmatpush2.xpose.msra.mxu0 0.0
        %451 = vmatprep.subr.mxu0 0.0
        %452 = vmatpush2.xpose.msra.mxu0 0.0
        %453 = vmatprep.subr.mxu0 0.0
        %454 = vmatpush2.xpose.msra.mxu0 0.0
        %455 = vmatprep.subr.mxu0 0.0
        %456 = vmatpush2.xpose.msra.mxu0 0.0
        %457 = vmatprep.subr.mxu0 0.0
        %458 = vmatpush2.xpose.msra.mxu0 0.0
        %459 = vmatprep.subr.mxu0 0.0
        %460 = vmatpush2.xpose.msra.mxu0 0.0
        %461 = vmatprep.subr.mxu0 0.0
        %462 = vmatpush2.xpose.msra.mxu0 0.0
        %463 = vmatprep.subr.mxu0 0.0
        %464 = vmatpush2.xpose.msra.mxu0 0.0
        %465 = vmatprep.subr.mxu0 0.0
        %466 = vmatpush2.xpose.msra.mxu0 0.0
        %467 = vmatprep.subr.mxu0 0.0
        %468 = vmatpush2.xpose.msra.mxu0 0.0
        %469 = vmatprep.subr.mxu0 0.0
        %470 = vmatpush2.xpose.msra.mxu0 0.0
        %471 = vmatprep.subr.mxu0 0.0
        %472 = vmatpush2.xpose.msra.mxu0 0.0
        %473 = vmatprep.subr.mxu0 0.0
        %474 = vmatpush2.xpose.msra.mxu0 0.0
        %475 = vmatprep.subr.mxu0 0.0
        %476 = vmatpush2.xpose.msra.mxu0 0.0
        %477 = vmatprep.mubr.f32.mxu0 0.0
        %478 = vmatmul.mubr.f32.gmra.mxu0 %v409
        %v479 = vpop.f32.mrf.mxu0
        %v480 = vadd.f32 0.0, %v479
        %v481 = vpop.f32.mrf.mxu0
        %482 = vdwg.mxu0
        %v483 = vmul.f32 %v480, 0.35355338
        %v484 = vsel %vm408, %v483, -inf
        %485 = vmax.xlane.f32.xlu0 %v484
        %v486 = vpop.xlane.xlu0 %485
        %v487 = vsub.f32 %v483, %v486
        %v488 = vmul.f32 %v487, 1.442695
        %v489 = vpow.pop %v488
        %v490 = vsel %vm408, %v489, 0.0
        %491 = vadd.xlane.f32.xlu0 %v490
        %v492 = vpop.xlane.xlu0 %491
        %v493 = vrcp.pop %v492
        %v494 = vmul.f32 %v489, %v493
        %495 = vrot.lane.b32.xlu0 %v402, 64
        %v496 = vpop.permute.xlu0 %495
        %v499 = vsel %vm408, %v494, 0
        %501 = vmatprep.subr.mxu0 0.0
        %502 = vmatpush1.msra.mxu0 0.0
        %503 = vmatprep.subr.mxu0 0.0
        %504 = vmatpush1.msra.mxu0 0.0
        %505 = vmatprep.subr.mxu0 0.0
        %506 = vmatpush1.msra.mxu0 0.0
        %507 = vmatprep.subr.mxu0 0.0
        %508 = vmatpush1.msra.mxu0 0.0
        %509 = vmatprep.subr.mxu0 0.0
        %510 = vmatpush1.msra.mxu0 0.0
        %511 = vmatprep.subr.mxu0 0.0
        %512 = vmatpush1.msra.mxu0 0.0
        %513 = vmatprep.subr.mxu0 0.0
        %514 = vmatpush1.msra.mxu0 0.0
        %515 = vmatprep.subr.mxu0 0.0
        %516 = vmatpush1.msra.mxu0 0.0
        %517 = vmatprep.subr.mxu0 0.0
        %518 = vmatpush1.msra.mxu0 0.0
        %519 = vmatprep.subr.mxu0 0.0
        %520 = vmatpush1.msra.mxu0 0.0
        %521 = vmatprep.subr.mxu0 0.0
        %522 = vmatpush1.msra.mxu0 0.0
        %523 = vmatprep.subr.mxu0 0.0
        %524 = vmatpush1.msra.mxu0 0.0
        %525 = vmatprep.subr.mxu0 0.0
        %526 = vmatpush1.msra.mxu0 0.0
        %527 = vmatprep.subr.mxu0 0.0
        %528 = vmatpush1.msra.mxu0 0.0
        %529 = vmatprep.subr.mxu0 0.0
        %530 = vmatpush1.msra.mxu0 0.0
        %531 = vmatprep.subr.mxu0 0.0
        %532 = vmatpush1.msra.mxu0 %v496
        %533 = vmatprep.subr.mxu0 0.0
        %534 = vmatpush2.msra.mxu0 0.0
        %535 = vmatprep.subr.mxu0 0.0
        %536 = vmatpush2.msra.mxu0 0.0
        %537 = vmatprep.subr.mxu0 0.0
        %538 = vmatpush2.msra.mxu0 0.0
        %539 = vmatprep.subr.mxu0 0.0
        %540 = vmatpush2.msra.mxu0 0.0
        %541 = vmatprep.subr.mxu0 0.0
        %542 = vmatpush2.msra.mxu0 0.0
        %543 = vmatprep.subr.mxu0 0.0
        %544 = vmatpush2.msra.mxu0 0.0
        %545 = vmatprep.subr.mxu0 0.0
        %546 = vmatpush2.msra.mxu0 0.0
        %547 = vmatprep.subr.mxu0 0.0
        %548 = vmatpush2.msra.mxu0 0.0
        %549 = vmatprep.subr.mxu0 0.0
        %550 = vmatpush2.msra.mxu0 0.0
        %551 = vmatprep.subr.mxu0 0.0
        %552 = vmatpush2.msra.mxu0 0.0
        %553 = vmatprep.subr.mxu0 0.0
        %554 = vmatpush2.msra.mxu0 0.0
        %555 = vmatprep.subr.mxu0 0.0
        %556 = vmatpush2.msra.mxu0 0.0
        %557 = vmatprep.subr.mxu0 0.0
        %558 = vmatpush2.msra.mxu0 0.0
        %559 = vmatprep.subr.mxu0 0.0
        %560 = vmatpush2.msra.mxu0 0.0
        %561 = vmatprep.subr.mxu0 0.0
        %562 = vmatpush2.msra.mxu0 0.0
        %563 = vmatprep.subr.mxu0 0.0
        %564 = vmatpush2.msra.mxu0 0.0
        %565 = vmatprep.mubr.f32.mxu0 0.0
        %566 = vmatmul.mubr.f32.gmra.mxu0 %v499
        %v567 = vpop.f32.mrf.mxu0
        %v568 = vadd.f32 0.0, %v567
        %v569 = vpop.f32.mrf.mxu0
        %570 = vdwg.mxu0
        %571 = vrot.lane.b32.xlu0 %v402, 120
        %v572 = vpop.permute.xlu0 %571
        %573 = vrot.lane.b32.xlu0 %v402, 88
        %v574 = vpop.permute.xlu0 %573
        %v575 = vsel %vm408, %v572, 0
        %v577 = vsel %vm408, %v574, 0
        %579 = vmatprep.subr.mxu0 0.0
        %580 = vmatpush1.xpose.msra.mxu0 0.0
        %581 = vmatprep.subr.mxu0 0.0
        %582 = vmatpush1.xpose.msra.mxu0 0.0
        %583 = vmatprep.subr.mxu0 0.0
        %584 = vmatpush1.xpose.msra.mxu0 0.0
        %585 = vmatprep.subr.mxu0 0.0
        %586 = vmatpush1.xpose.msra.mxu0 0.0
        %587 = vmatprep.subr.mxu0 0.0
        %588 = vmatpush1.xpose.msra.mxu0 0.0
        %589 = vmatprep.subr.mxu0 0.0
        %590 = vmatpush1.xpose.msra.mxu0 0.0
        %591 = vmatprep.subr.mxu0 0.0
        %592 = vmatpush1.xpose.msra.mxu0 0.0
        %593 = vmatprep.subr.mxu0 0.0
        %594 = vmatpush1.xpose.msra.mxu0 0.0
        %595 = vmatprep.subr.mxu0 0.0
        %596 = vmatpush1.xpose.msra.mxu0 0.0
        %597 = vmatprep.subr.mxu0 0.0
        %598 = vmatpush1.xpose.msra.mxu0 0.0
        %599 = vmatprep.subr.mxu0 0.0
        %600 = vmatpush1.xpose.msra.mxu0 0.0
        %601 = vmatprep.subr.mxu0 0.0
        %602 = vmatpush1.xpose.msra.mxu0 0.0
        %603 = vmatprep.subr.mxu0 0.0
        %604 = vmatpush1.xpose.msra.mxu0 0.0
        %605 = vmatprep.subr.mxu0 0.0
        %606 = vmatpush1.xpose.msra.mxu0 0.0
        %607 = vmatprep.subr.mxu0 0.0
        %608 = vmatpush1.xpose.msra.mxu0 0.0
        %609 = vmatprep.subr.mxu0 0.0
        %610 = vmatpush1.xpose.msra.mxu0 %v577
        %611 = vmatprep.subr.mxu0 0.0
        %612 = vmatpush2.xpose.msra.mxu0 0.0
        %613 = vmatprep.subr.mxu0 0.0
        %614 = vmatpush2.xpose.msra.mxu0 0.0
        %615 = vmatprep.subr.mxu0 0.0
        %616 = vmatpush2.xpose.msra.mxu0 0.0
        %617 = vmatprep.subr.mxu0 0.0
        %618 = vmatpush2.xpose.msra.mxu0 0.0
        %619 = vmatprep.subr.mxu0 0.0
        %620 = vmatpush2.xpose.msra.mxu0 0.0
        %621 = vmatprep.subr.mxu0 0.0
        %622 = vmatpush2.xpose.msra.mxu0 0.0
        %623 = vmatprep.subr.mxu0 0.0
        %624 = vmatpush2.xpose.msra.mxu0 0.0
        %625 = vmatprep.subr.mxu0 0.0
        %626 = vmatpush2.xpose.msra.mxu0 0.0
        %627 = vmatprep.subr.mxu0 0.0
        %628 = vmatpush2.xpose.msra.mxu0 0.0
        %629 = vmatprep.subr.mxu0 0.0
        %630 = vmatpush2.xpose.msra.mxu0 0.0
        %631 = vmatprep.subr.mxu0 0.0
        %632 = vmatpush2.xpose.msra.mxu0 0.0
        %633 = vmatprep.subr.mxu0 0.0
        %634 = vmatpush2.xpose.msra.mxu0 0.0
        %635 = vmatprep.subr.mxu0 0.0
        %636 = vmatpush2.xpose.msra.mxu0 0.0
        %637 = vmatprep.subr.mxu0 0.0
        %638 = vmatpush2.xpose.msra.mxu0 0.0
        %639 = vmatprep.subr.mxu0 0.0
        %640 = vmatpush2.xpose.msra.mxu0 0.0
        %641 = vmatprep.subr.mxu0 0.0
        %642 = vmatpush2.xpose.msra.mxu0 0.0
        %643 = vmatprep.mubr.f32.mxu0 0.0
        %644 = vmatmul.mubr.f32.gmra.mxu0 %v575
        %v645 = vpop.f32.mrf.mxu0
        %v646 = vadd.f32 0.0, %v645
        %v647 = vpop.f32.mrf.mxu0
        %648 = vdwg.mxu0
        %v649 = vmul.f32 %v646, 0.35355338
        %v650 = vsel %vm408, %v649, -inf
        %651 = vmax.xlane.f32.xlu0 %v650
        %v652 = vpop.xlane.xlu0 %651
        %v653 = vsub.f32 %v649, %v652
        %v654 = vmul.f32 %v653, 1.442695
        %v655 = vpow.pop %v654
        %v656 = vsel %vm408, %v655, 0.0
        %657 = vadd.xlane.f32.xlu0 %v656
        %v658 = vpop.xlane.xlu0 %657
        %v659 = vrcp.pop %v658
        %v660 = vmul.f32 %v655, %v659
        %661 = vrot.lane.b32.xlu0 %v402, 56
        %v662 = vpop.permute.xlu0 %661
        %v665 = vsel %vm408, %v660, 0
        %667 = vmatprep.subr.mxu0 0.0
        %668 = vmatpush1.msra.mxu0 0.0
        %669 = vmatprep.subr.mxu0 0.0
        %670 = vmatpush1.msra.mxu0 0.0
        %671 = vmatprep.subr.mxu0 0.0
        %672 = vmatpush1.msra.mxu0 0.0
        %673 = vmatprep.subr.mxu0 0.0
        %674 = vmatpush1.msra.mxu0 0.0
        %675 = vmatprep.subr.mxu0 0.0
        %676 = vmatpush1.msra.mxu0 0.0
        %677 = vmatprep.subr.mxu0 0.0
        %678 = vmatpush1.msra.mxu0 0.0
        %679 = vmatprep.subr.mxu0 0.0
        %680 = vmatpush1.msra.mxu0 0.0
        %681 = vmatprep.subr.mxu0 0.0
        %682 = vmatpush1.msra.mxu0 0.0
        %683 = vmatprep.subr.mxu0 0.0
        %684 = vmatpush1.msra.mxu0 0.0
        %685 = vmatprep.subr.mxu0 0.0
        %686 = vmatpush1.msra.mxu0 0.0
        %687 = vmatprep.subr.mxu0 0.0
        %688 = vmatpush1.msra.mxu0 0.0
        %689 = vmatprep.subr.mxu0 0.0
        %690 = vmatpush1.msra.mxu0 0.0
        %691 = vmatprep.subr.mxu0 0.0
        %692 = vmatpush1.msra.mxu0 0.0
        %693 = vmatprep.subr.mxu0 0.0
        %694 = vmatpush1.msra.mxu0 0.0
        %695 = vmatprep.subr.mxu0 0.0
        %696 = vmatpush1.msra.mxu0 0.0
        %697 = vmatprep.subr.mxu0 0.0
        %698 = vmatpush1.msra.mxu0 %v662
        %699 = vmatprep.subr.mxu0 0.0
        %700 = vmatpush2.msra.mxu0 0.0
        %701 = vmatprep.subr.mxu0 0.0
        %702 = vmatpush2.msra.mxu0 0.0
        %703 = vmatprep.subr.mxu0 0.0
        %704 = vmatpush2.msra.mxu0 0.0
        %705 = vmatprep.subr.mxu0 0.0
        %706 = vmatpush2.msra.mxu0 0.0
        %707 = vmatprep.subr.mxu0 0.0
        %708 = vmatpush2.msra.mxu0 0.0
        %709 = vmatprep.subr.mxu0 0.0
        %710 = vmatpush2.msra.mxu0 0.0
        %711 = vmatprep.subr.mxu0 0.0
        %712 = vmatpush2.msra.mxu0 0.0
        %713 = vmatprep.subr.mxu0 0.0
        %714 = vmatpush2.msra.mxu0 0.0
        %715 = vmatprep.subr.mxu0 0.0
        %716 = vmatpush2.msra.mxu0 0.0
        %717 = vmatprep.subr.mxu0 0.0
        %718 = vmatpush2.msra.mxu0 0.0
        %719 = vmatprep.subr.mxu0 0.0
        %720 = vmatpush2.msra.mxu0 0.0
        %721 = vmatprep.subr.mxu0 0.0
        %722 = vmatpush2.msra.mxu0 0.0
        %723 = vmatprep.subr.mxu0 0.0
        %724 = vmatpush2.msra.mxu0 0.0
        %725 = vmatprep.subr.mxu0 0.0
        %726 = vmatpush2.msra.mxu0 0.0
        %727 = vmatprep.subr.mxu0 0.0
        %728 = vmatpush2.msra.mxu0 0.0
        %729 = vmatprep.subr.mxu0 0.0
        %730 = vmatpush2.msra.mxu0 0.0
        %731 = vmatprep.mubr.f32.mxu0 0.0
        %732 = vmatmul.mubr.f32.gmra.mxu0 %v665
        %v733 = vpop.f32.mrf.mxu0
        %v734 = vadd.f32 0.0, %v733
        %v735 = vpop.f32.mrf.mxu0
        %736 = vdwg.mxu0
        %737 = vrot.lane.b32.xlu0 %v402, 112
        %v738 = vpop.permute.xlu0 %737
        %739 = vrot.lane.b32.xlu0 %v402, 80
        %v740 = vpop.permute.xlu0 %739
        %v741 = vsel %vm408, %v738, 0
        %v743 = vsel %vm408, %v740, 0
        %745 = vmatprep.subr.mxu0 0.0
        %746 = vmatpush1.xpose.msra.mxu0 0.0
        %747 = vmatprep.subr.mxu0 0.0
        %748 = vmatpush1.xpose.msra.mxu0 0.0
        %749 = vmatprep.subr.mxu0 0.0
        %750 = vmatpush1.xpose.msra.mxu0 0.0
        %751 = vmatprep.subr.mxu0 0.0
        %752 = vmatpush1.xpose.msra.mxu0 0.0
        %753 = vmatprep.subr.mxu0 0.0
        %754 = vmatpush1.xpose.msra.mxu0 0.0
        %755 = vmatprep.subr.mxu0 0.0
        %756 = vmatpush1.xpose.msra.mxu0 0.0
        %757 = vmatprep.subr.mxu0 0.0
        %758 = vmatpush1.xpose.msra.mxu0 0.0
        %759 = vmatprep.subr.mxu0 0.0
        %760 = vmatpush1.xpose.msra.mxu0 0.0
        %761 = vmatprep.subr.mxu0 0.0
        %762 = vmatpush1.xpose.msra.mxu0 0.0
        %763 = vmatprep.subr.mxu0 0.0
        %764 = vmatpush1.xpose.msra.mxu0 0.0
        %765 = vmatprep.subr.mxu0 0.0
        %766 = vmatpush1.xpose.msra.mxu0 0.0
        %767 = vmatprep.subr.mxu0 0.0
        %768 = vmatpush1.xpose.msra.mxu0 0.0
        %769 = vmatprep.subr.mxu0 0.0
        %770 = vmatpush1.xpose.msra.mxu0 0.0
        %771 = vmatprep.subr.mxu0 0.0
        %772 = vmatpush1.xpose.msra.mxu0 0.0
        %773 = vmatprep.subr.mxu0 0.0
        %774 = vmatpush1.xpose.msra.mxu0 0.0
        %775 = vmatprep.subr.mxu0 0.0
        %776 = vmatpush1.xpose.msra.mxu0 %v743
        %777 = vmatprep.subr.mxu0 0.0
        %778 = vmatpush2.xpose.msra.mxu0 0.0
        %779 = vmatprep.subr.mxu0 0.0
        %780 = vmatpush2.xpose.msra.mxu0 0.0
        %781 = vmatprep.subr.mxu0 0.0
        %782 = vmatpush2.xpose.msra.mxu0 0.0
        %783 = vmatprep.subr.mxu0 0.0
        %784 = vmatpush2.xpose.msra.mxu0 0.0
        %785 = vmatprep.subr.mxu0 0.0
        %786 = vmatpush2.xpose.msra.mxu0 0.0
        %787 = vmatprep.subr.mxu0 0.0
        %788 = vmatpush2.xpose.msra.mxu0 0.0
        %789 = vmatprep.subr.mxu0 0.0
        %790 = vmatpush2.xpose.msra.mxu0 0.0
        %791 = vmatprep.subr.mxu0 0.0
        %792 = vmatpush2.xpose.msra.mxu0 0.0
        %793 = vmatprep.subr.mxu0 0.0
        %794 = vmatpush2.xpose.msra.mxu0 0.0
        %795 = vmatprep.subr.mxu0 0.0
        %796 = vmatpush2.xpose.msra.mxu0 0.0
        %797 = vmatprep.subr.mxu0 0.0
        %798 = vmatpush2.xpose.msra.mxu0 0.0
        %799 = vmatprep.subr.mxu0 0.0
        %800 = vmatpush2.xpose.msra.mxu0 0.0
        %801 = vmatprep.subr.mxu0 0.0
        %802 = vmatpush2.xpose.msra.mxu0 0.0
        %803 = vmatprep.subr.mxu0 0.0
        %804 = vmatpush2.xpose.msra.mxu0 0.0
        %805 = vmatprep.subr.mxu0 0.0
        %806 = vmatpush2.xpose.msra.mxu0 0.0
        %807 = vmatprep.subr.mxu0 0.0
        %808 = vmatpush2.xpose.msra.mxu0 0.0
        %809 = vmatprep.mubr.f32.mxu0 0.0
        %810 = vmatmul.mubr.f32.gmra.mxu0 %v741
        %v811 = vpop.f32.mrf.mxu0
        %v812 = vadd.f32 0.0, %v811
        %v813 = vpop.f32.mrf.mxu0
        %814 = vdwg.mxu0
        %v815 = vmul.f32 %v812, 0.35355338
        %v816 = vsel %vm408, %v815, -inf
        %817 = vmax.xlane.f32.xlu0 %v816
        %v818 = vpop.xlane.xlu0 %817
        %v819 = vsub.f32 %v815, %v818
        %v820 = vmul.f32 %v819, 1.442695
        %v821 = vpow.pop %v820
        %v822 = vsel %vm408, %v821, 0.0
        %823 = vadd.xlane.f32.xlu0 %v822
        %v824 = vpop.xlane.xlu0 %823
        %v825 = vrcp.pop %v824
        %v826 = vmul.f32 %v821, %v825
        %827 = vrot.lane.b32.xlu0 %v402, 48
        %v828 = vpop.permute.xlu0 %827
        %v831 = vsel %vm408, %v826, 0
        %833 = vmatprep.subr.mxu0 0.0
        %834 = vmatpush1.msra.mxu0 0.0
        %835 = vmatprep.subr.mxu0 0.0
        %836 = vmatpush1.msra.mxu0 0.0
        %837 = vmatprep.subr.mxu0 0.0
        %838 = vmatpush1.msra.mxu0 0.0
        %839 = vmatprep.subr.mxu0 0.0
        %840 = vmatpush1.msra.mxu0 0.0
        %841 = vmatprep.subr.mxu0 0.0
        %842 = vmatpush1.msra.mxu0 0.0
        %843 = vmatprep.subr.mxu0 0.0
        %844 = vmatpush1.msra.mxu0 0.0
        %845 = vmatprep.subr.mxu0 0.0
        %846 = vmatpush1.msra.mxu0 0.0
        %847 = vmatprep.subr.mxu0 0.0
        %848 = vmatpush1.msra.mxu0 0.0
        %849 = vmatprep.subr.mxu0 0.0
        %850 = vmatpush1.msra.mxu0 0.0
        %851 = vmatprep.subr.mxu0 0.0
        %852 = vmatpush1.msra.mxu0 0.0
        %853 = vmatprep.subr.mxu0 0.0
        %854 = vmatpush1.msra.mxu0 0.0
        %855 = vmatprep.subr.mxu0 0.0
        %856 = vmatpush1.msra.mxu0 0.0
        %857 = vmatprep.subr.mxu0 0.0
        %858 = vmatpush1.msra.mxu0 0.0
        %859 = vmatprep.subr.mxu0 0.0
        %860 = vmatpush1.msra.mxu0 0.0
        %861 = vmatprep.subr.mxu0 0.0
        %862 = vmatpush1.msra.mxu0 0.0
        %863 = vmatprep.subr.mxu0 0.0
        %864 = vmatpush1.msra.mxu0 %v828
        %865 = vmatprep.subr.mxu0 0.0
        %866 = vmatpush2.msra.mxu0 0.0
        %867 = vmatprep.subr.mxu0 0.0
        %868 = vmatpush2.msra.mxu0 0.0
        %869 = vmatprep.subr.mxu0 0.0
        %870 = vmatpush2.msra.mxu0 0.0
        %871 = vmatprep.subr.mxu0 0.0
        %872 = vmatpush2.msra.mxu0 0.0
        %873 = vmatprep.subr.mxu0 0.0
        %874 = vmatpush2.msra.mxu0 0.0
        %875 = vmatprep.subr.mxu0 0.0
        %876 = vmatpush2.msra.mxu0 0.0
        %877 = vmatprep.subr.mxu0 0.0
        %878 = vmatpush2.msra.mxu0 0.0
        %879 = vmatprep.subr.mxu0 0.0
        %880 = vmatpush2.msra.mxu0 0.0
        %881 = vmatprep.subr.mxu0 0.0
        %882 = vmatpush2.msra.mxu0 0.0
        %883 = vmatprep.subr.mxu0 0.0
        %884 = vmatpush2.msra.mxu0 0.0
        %885 = vmatprep.subr.mxu0 0.0
        %886 = vmatpush2.msra.mxu0 0.0
        %887 = vmatprep.subr.mxu0 0.0
        %888 = vmatpush2.msra.mxu0 0.0
        %889 = vmatprep.subr.mxu0 0.0
        %890 = vmatpush2.msra.mxu0 0.0
        %891 = vmatprep.subr.mxu0 0.0
        %892 = vmatpush2.msra.mxu0 0.0
        %893 = vmatprep.subr.mxu0 0.0
        %894 = vmatpush2.msra.mxu0 0.0
        %895 = vmatprep.subr.mxu0 0.0
        %896 = vmatpush2.msra.mxu0 0.0
        %897 = vmatprep.mubr.f32.mxu0 0.0
        %898 = vmatmul.mubr.f32.gmra.mxu0 %v831
        %v899 = vpop.f32.mrf.mxu0
        %v900 = vadd.f32 0.0, %v899
        %v901 = vpop.f32.mrf.mxu0
        %902 = vdwg.mxu0
        %903 = vrot.lane.b32.xlu0 %v402, 104
        %v904 = vpop.permute.xlu0 %903
        %905 = vrot.lane.b32.xlu0 %v402, 72
        %v906 = vpop.permute.xlu0 %905
        %v907 = vsel %vm408, %v904, 0
        %v909 = vsel %vm408, %v906, 0
        %911 = vmatprep.subr.mxu0 0.0
        %912 = vmatpush1.xpose.msra.mxu0 0.0
        %913 = vmatprep.subr.mxu0 0.0
        %914 = vmatpush1.xpose.msra.mxu0 0.0
        %915 = vmatprep.subr.mxu0 0.0
        %916 = vmatpush1.xpose.msra.mxu0 0.0
        %917 = vmatprep.subr.mxu0 0.0
        %918 = vmatpush1.xpose.msra.mxu0 0.0
        %919 = vmatprep.subr.mxu0 0.0
        %920 = vmatpush1.xpose.msra.mxu0 0.0
        %921 = vmatprep.subr.mxu0 0.0
        %922 = vmatpush1.xpose.msra.mxu0 0.0
        %923 = vmatprep.subr.mxu0 0.0
        %924 = vmatpush1.xpose.msra.mxu0 0.0
        %925 = vmatprep.subr.mxu0 0.0
        %926 = vmatpush1.xpose.msra.mxu0 0.0
        %927 = vmatprep.subr.mxu0 0.0
        %928 = vmatpush1.xpose.msra.mxu0 0.0
        %929 = vmatprep.subr.mxu0 0.0
        %930 = vmatpush1.xpose.msra.mxu0 0.0
        %931 = vmatprep.subr.mxu0 0.0
        %932 = vmatpush1.xpose.msra.mxu0 0.0
        %933 = vmatprep.subr.mxu0 0.0
        %934 = vmatpush1.xpose.msra.mxu0 0.0
        %935 = vmatprep.subr.mxu0 0.0
        %936 = vmatpush1.xpose.msra.mxu0 0.0
        %937 = vmatprep.subr.mxu0 0.0
        %938 = vmatpush1.xpose.msra.mxu0 0.0
        %939 = vmatprep.subr.mxu0 0.0
        %940 = vmatpush1.xpose.msra.mxu0 0.0
        %941 = vmatprep.subr.mxu0 0.0
        %942 = vmatpush1.xpose.msra.mxu0 %v909
        %943 = vmatprep.subr.mxu0 0.0
        %944 = vmatpush2.xpose.msra.mxu0 0.0
        %945 = vmatprep.subr.mxu0 0.0
        %946 = vmatpush2.xpose.msra.mxu0 0.0
        %947 = vmatprep.subr.mxu0 0.0
        %948 = vmatpush2.xpose.msra.mxu0 0.0
        %949 = vmatprep.subr.mxu0 0.0
        %950 = vmatpush2.xpose.msra.mxu0 0.0
        %951 = vmatprep.subr.mxu0 0.0
        %952 = vmatpush2.xpose.msra.mxu0 0.0
        %953 = vmatprep.subr.mxu0 0.0
        %954 = vmatpush2.xpose.msra.mxu0 0.0
        %955 = vmatprep.subr.mxu0 0.0
        %956 = vmatpush2.xpose.msra.mxu0 0.0
        %957 = vmatprep.subr.mxu0 0.0
        %958 = vmatpush2.xpose.msra.mxu0 0.0
        %959 = vmatprep.subr.mxu0 0.0
        %960 = vmatpush2.xpose.msra.mxu0 0.0
        %961 = vmatprep.subr.mxu0 0.0
        %962 = vmatpush2.xpose.msra.mxu0 0.0
        %963 = vmatprep.subr.mxu0 0.0
        %964 = vmatpush2.xpose.msra.mxu0 0.0
        %965 = vmatprep.subr.mxu0 0.0
        %966 = vmatpush2.xpose.msra.mxu0 0.0
        %967 = vmatprep.subr.mxu0 0.0
        %968 = vmatpush2.xpose.msra.mxu0 0.0
        %969 = vmatprep.subr.mxu0 0.0
        %970 = vmatpush2.xpose.msra.mxu0 0.0
        %971 = vmatprep.subr.mxu0 0.0
        %972 = vmatpush2.xpose.msra.mxu0 0.0
        %973 = vmatprep.subr.mxu0 0.0
        %974 = vmatpush2.xpose.msra.mxu0 0.0
        %975 = vmatprep.mubr.f32.mxu0 0.0
        %976 = vmatmul.mubr.f32.gmra.mxu0 %v907
        %v977 = vpop.f32.mrf.mxu0
        %v978 = vadd.f32 0.0, %v977
        %v979 = vpop.f32.mrf.mxu0
        %980 = vdwg.mxu0
        %v981 = vmul.f32 %v978, 0.35355338
        %v982 = vsel %vm408, %v981, -inf
        %983 = vmax.xlane.f32.xlu0 %v982
        %v984 = vpop.xlane.xlu0 %983
        %v985 = vsub.f32 %v981, %v984
        %v986 = vmul.f32 %v985, 1.442695
        %v987 = vpow.pop %v986
        %v988 = vsel %vm408, %v987, 0.0
        %989 = vadd.xlane.f32.xlu0 %v988
        %v990 = vpop.xlane.xlu0 %989
        %v991 = vrcp.pop %v990
        %v992 = vmul.f32 %v987, %v991
        %993 = vrot.lane.b32.xlu0 %v402, 40
        %v994 = vpop.permute.xlu0 %993
        %v997 = vsel %vm408, %v992, 0
        %999 = vmatprep.subr.mxu0 0.0
        %1000 = vmatpush1.msra.mxu0 0.0
        %1001 = vmatprep.subr.mxu0 0.0
        %1002 = vmatpush1.msra.mxu0 0.0
        %1003 = vmatprep.subr.mxu0 0.0
        %1004 = vmatpush1.msra.mxu0 0.0
        %1005 = vmatprep.subr.mxu0 0.0
        %1006 = vmatpush1.msra.mxu0 0.0
        %1007 = vmatprep.subr.mxu0 0.0
        %1008 = vmatpush1.msra.mxu0 0.0
        %1009 = vmatprep.subr.mxu0 0.0
        %1010 = vmatpush1.msra.mxu0 0.0
        %1011 = vmatprep.subr.mxu0 0.0
        %1012 = vmatpush1.msra.mxu0 0.0
        %1013 = vmatprep.subr.mxu0 0.0
        %1014 = vmatpush1.msra.mxu0 0.0
        %1015 = vmatprep.subr.mxu0 0.0
        %1016 = vmatpush1.msra.mxu0 0.0
        %1017 = vmatprep.subr.mxu0 0.0
        %1018 = vmatpush1.msra.mxu0 0.0
        %1019 = vmatprep.subr.mxu0 0.0
        %1020 = vmatpush1.msra.mxu0 0.0
        %1021 = vmatprep.subr.mxu0 0.0
        %1022 = vmatpush1.msra.mxu0 0.0
        %1023 = vmatprep.subr.mxu0 0.0
        %1024 = vmatpush1.msra.mxu0 0.0
        %1025 = vmatprep.subr.mxu0 0.0
        %1026 = vmatpush1.msra.mxu0 0.0
        %1027 = vmatprep.subr.mxu0 0.0
        %1028 = vmatpush1.msra.mxu0 0.0
        %1029 = vmatprep.subr.mxu0 0.0
        %1030 = vmatpush1.msra.mxu0 %v994
        %1031 = vmatprep.subr.mxu0 0.0
        %1032 = vmatpush2.msra.mxu0 0.0
        %1033 = vmatprep.subr.mxu0 0.0
        %1034 = vmatpush2.msra.mxu0 0.0
        %1035 = vmatprep.subr.mxu0 0.0
        %1036 = vmatpush2.msra.mxu0 0.0
        %1037 = vmatprep.subr.mxu0 0.0
        %1038 = vmatpush2.msra.mxu0 0.0
        %1039 = vmatprep.subr.mxu0 0.0
        %1040 = vmatpush2.msra.mxu0 0.0
        %1041 = vmatprep.subr.mxu0 0.0
        %1042 = vmatpush2.msra.mxu0 0.0
        %1043 = vmatprep.subr.mxu0 0.0
        %1044 = vmatpush2.msra.mxu0 0.0
        %1045 = vmatprep.subr.mxu0 0.0
        %1046 = vmatpush2.msra.mxu0 0.0
        %1047 = vmatprep.subr.mxu0 0.0
        %1048 = vmatpush2.msra.mxu0 0.0
        %1049 = vmatprep.subr.mxu0 0.0
        %1050 = vmatpush2.msra.mxu0 0.0
        %1051 = vmatprep.subr.mxu0 0.0
        %1052 = vmatpush2.msra.mxu0 0.0
        %1053 = vmatprep.subr.mxu0 0.0
        %1054 = vmatpush2.msra.mxu0 0.0
        %1055 = vmatprep.subr.mxu0 0.0
        %1056 = vmatpush2.msra.mxu0 0.0
        %1057 = vmatprep.subr.mxu0 0.0
        %1058 = vmatpush2.msra.mxu0 0.0
        %1059 = vmatprep.subr.mxu0 0.0
        %1060 = vmatpush2.msra.mxu0 0.0
        %1061 = vmatprep.subr.mxu0 0.0
        %1062 = vmatpush2.msra.mxu0 0.0
        %1063 = vmatprep.mubr.f32.mxu0 0.0
        %1064 = vmatmul.mubr.f32.gmra.mxu0 %v997
        %v1065 = vpop.f32.mrf.mxu0
        %v1066 = vadd.f32 0.0, %v1065
        %v1067 = vpop.f32.mrf.mxu0
        %1068 = vdwg.mxu0
        %1070 = vrot.lane.b32.xlu0 %v734, 8
        %v1071 = vpop.permute.xlu0 %1070
        %1074 = vrot.lane.b32.xlu0 %v900, 16
        %v1075 = vpop.permute.xlu0 %1074
        %1078 = vrot.lane.b32.xlu0 %v1066, 24
        %v1079 = vpop.permute.xlu0 %1078
        %v1081 = vsel %vm408, %v568, %v1071
        %vm1082 = vcmask 130048
        %v1083 = vsel %vm1082, %v1081, %v1075
        %vm1084 = vcmask 195584
        %v1085 = vsel %vm1084, %v1083, %v1079
        %v1086 = vld [vmem:[#allocation7] sm:$0xff]
        %v1087 = vld [vmem:[#allocation7 + $0x8] sm:$0xff]
        %v1088 = vld [vmem:[#allocation7 + $0x10] sm:$0xff]
        %v1089 = vld [vmem:[#allocation7 + $0x18] sm:$0xff]
        %v1090 = vld [vmem:[%s5] sm:$0x1]
        %v1092 = vlaneseq
        %v1093 = vshrl.u32 %v1092, 7
        %v1094 = vsub.s32 0, %v1093
        %v1095 = vrot.slane %v1090, %v1094
        %v1098 = vsel %vm297, %v1085, 0
        %1100 = vmatprep.subr.mxu0 0.0
        %1101 = vmatpush1.msra.mxu0 0.0
        %1102 = vmatprep.subr.mxu0 0.0
        %1103 = vmatpush1.msra.mxu0 0.0
        %1104 = vmatprep.subr.mxu0 0.0
        %1105 = vmatpush1.msra.mxu0 0.0
        %1106 = vmatprep.subr.mxu0 0.0
        %1107 = vmatpush1.msra.mxu0 0.0
        %1108 = vmatprep.subr.mxu0 0.0
        %1109 = vmatpush1.msra.mxu0 0.0
        %1110 = vmatprep.subr.mxu0 0.0
        %1111 = vmatpush1.msra.mxu0 0.0
        %1112 = vmatprep.subr.mxu0 0.0
        %1113 = vmatpush1.msra.mxu0 0.0
        %1114 = vmatprep.subr.mxu0 0.0
        %1115 = vmatpush1.msra.mxu0 0.0
        %1116 = vmatprep.subr.mxu0 0.0
        %1117 = vmatpush1.msra.mxu0 0.0
        %1118 = vmatprep.subr.mxu0 0.0
        %1119 = vmatpush1.msra.mxu0 0.0
        %1120 = vmatprep.subr.mxu0 0.0
        %1121 = vmatpush1.msra.mxu0 0.0
        %1122 = vmatprep.subr.mxu0 0.0
        %1123 = vmatpush1.msra.mxu0 0.0
        %1124 = vmatprep.subr.mxu0 0.0
        %1125 = vmatpush1.msra.mxu0 %v1089
        %1126 = vmatprep.subr.mxu0 0.0
        %1127 = vmatpush1.msra.mxu0 %v1088
        %1128 = vmatprep.subr.mxu0 0.0
        %1129 = vmatpush1.msra.mxu0 %v1087
        %1130 = vmatprep.subr.mxu0 0.0
        %1131 = vmatpush1.msra.mxu0 %v1086
        %1132 = vmatprep.subr.mxu0 0.0
        %1133 = vmatpush2.msra.mxu0 0.0
        %1134 = vmatprep.subr.mxu0 0.0
        %1135 = vmatpush2.msra.mxu0 0.0
        %1136 = vmatprep.subr.mxu0 0.0
        %1137 = vmatpush2.msra.mxu0 0.0
        %1138 = vmatprep.subr.mxu0 0.0
        %1139 = vmatpush2.msra.mxu0 0.0
        %1140 = vmatprep.subr.mxu0 0.0
        %1141 = vmatpush2.msra.mxu0 0.0
        %1142 = vmatprep.subr.mxu0 0.0
        %1143 = vmatpush2.msra.mxu0 0.0
        %1144 = vmatprep.subr.mxu0 0.0
        %1145 = vmatpush2.msra.mxu0 0.0
        %1146 = vmatprep.subr.mxu0 0.0
        %1147 = vmatpush2.msra.mxu0 0.0
        %1148 = vmatprep.subr.mxu0 0.0
        %1149 = vmatpush2.msra.mxu0 0.0
        %1150 = vmatprep.subr.mxu0 0.0
        %1151 = vmatpush2.msra.mxu0 0.0
        %1152 = vmatprep.subr.mxu0 0.0
        %1153 = vmatpush2.msra.mxu0 0.0
        %1154 = vmatprep.subr.mxu0 0.0
        %1155 = vmatpush2.msra.mxu0 0.0
        %1156 = vmatprep.subr.mxu0 0.0
        %1157 = vmatpush2.msra.mxu0 0.0
        %1158 = vmatprep.subr.mxu0 0.0
        %1159 = vmatpush2.msra.mxu0 0.0
        %1160 = vmatprep.subr.mxu0 0.0
        %1161 = vmatpush2.msra.mxu0 0.0
        %1162 = vmatprep.subr.mxu0 0.0
        %1163 = vmatpush2.msra.mxu0 0.0
        %1164 = vmatprep.mubr.f32.mxu0 0.0
        %1165 = vmatmul.mubr.f32.gmra.mxu0 %v1098
        %v1166 = vpop.f32.mrf.mxu0
        %v1167 = vadd.f32 %v1095, %v1166
        %v1168 = vpop.f32.mrf.mxu0
        %1169 = vdwg.mxu0
        %v1170 = vadd.f32 %v1167, %v296
        %1171 = vst.msk [vmem:[%s295] sm:$0xff] %vm297, %v1170
        %s1172 = sand.u32 %s163, 1
        %s1173 = scalar_lea.sflag [#allocation4], %s1172
        %s1174 = sand.u32 %s163, 1
        %s1175 = smul.addr %s1174, 8
        %s1176 = scalar_lea.vmem [#allocation8], %s1175
        // Predicated region
        $region57: #{tpu_custom_call.1} parent=43 // pred_check
          %p1177 = pneg %p173
        $region58: #{tpu_custom_call.1} parent=43 // pred_check_branch
          %1179 = sbr.rel (%p1177) target = $region60
        $region59: #{tpu_custom_call.1} parent=43 // pred_region
          %s1181 = ssub.s32 128, 128
          %1182 = vsyncadd %s1173, %s1181
          %s1183 = smul.addr %s24, 128
          %s1184 = scalar_lea.hbm %s6, %s1183
          %s1186 = sshll.u32 %s1176, 4
          %s1187 = int_to_ptr.vmem [resolvable:$true] %s1186
          %1189 = dma.vmem_to_hbm [thread:$0]  %s1187, 128, %s1184, %s1173
        $region60: #{tpu_custom_call.1} parent=43 // pred_fallthru
          _
      $region44: #{tpu_custom_call.1} parent=5 // pred_fallthru
        _
      %p1190 = scmp.le.s32.totalorder 2, %s19
      // Predicated region
      $region61: #{tpu_custom_call.1} parent=5 // pred_check
        %p1191 = pneg %p1190
      $region62: #{tpu_custom_call.1} parent=5 // pred_check_branch
        %1193 = sbr.rel (%p1191) target = $region64
      $region63: #{tpu_custom_call.1} parent=5 // pred_region
        %s1194 = ssub.s32 %s19, 2
        // Predicated region
        $region65: #{tpu_custom_call.1} parent=63 // pred_check
          %p1195 = pneg %p179
        $region66: #{tpu_custom_call.1} parent=63 // pred_check_branch
          %1197 = sbr.rel (%p1195) target = $region68
        $region67: #{tpu_custom_call.1} parent=63 // pred_region
          %s1198 = sand.u32 %s164, 1
          %s1199 = scalar_lea.sflag [#allocation4], %s1198
          %s1200 = sand.u32 %s164, 1
          %s1201 = smul.addr %s1200, 8
          %s1202 = scalar_lea.vmem [#allocation8], %s1201
          %1203 = dma.done %s1199, 128
        $region68: #{tpu_custom_call.1} parent=63 // pred_fallthru
          _
      $region64: #{tpu_custom_call.1} parent=5 // pred_fallthru
        _
    $region6: #{tpu_custom_call.1} parent=1 // loop_footer
      %s23 = sadd.s32 1, %s19
    $region7: #{tpu_custom_call.1} parent=1 // loop_footer_branch
      %18 = sbr.rel target = $region3
    $region8: #{tpu_custom_call.1} parent=1 // loop_exit
      _
    %1204 = vsyncpa [#allocation3], 1
    %s1205 = scalar_lea.sflag [#allocation3], 1
    %1206 = vsyncpa %s1205, 1
    %1207 = vsyncpa [#allocation6], 1
    %1208 = vsyncpa [#allocation4], 1
    %s1209 = scalar_lea.sflag [#allocation4], 1
    %1210 = vsyncpa %s1209, 1

</llo_original>
